<compile_context>
chip_gen: v7x
topology: tpu7x:2x2x1
jax: 0.10.0
libtpu: 0.0.40
codegen_flags: <defaults>
</compile_context>

<pallas_src>
import functools

import jax
import jax.numpy as jnp
from jax import lax
from jax.experimental import pallas as pl
from jax.experimental.pallas import tpu as pltpu

NEG_SLOPE = 0.01   # nn.LeakyReLU default negative_slope
BN_EPS = 1e-5      # nn.BatchNorm2d default eps


# ---------------------------------------------------------------------------
# Fused kernel: conv1x1 + BN + LeakyReLU -> dwconv3x3(stride) + BN + LeakyReLU
#               -> conv1x1 + BN (+ residual).  One batch element per grid step.
# ---------------------------------------------------------------------------
def _ep_fused_kernel(x_ref, w1_ref, s1_ref, b1_ref, wd_ref, sd_ref, bd_ref,
                     w2_ref, s2_ref, b2_ref, o_ref, ypad_ref, *,
                     H, W, Ho, Wo, stride, residual):
    Cin = x_ref.shape[1]
    dw = w1_ref.shape[1]
    Cout = w2_ref.shape[1]
    HW = H * W

    # ---- stage 1: 1x1 conv + folded BN + LeakyReLU -------------------------
    x_cm = x_ref[...].reshape(Cin, HW)          # channels-major, lane-dense load
    x_pm = x_cm.T                               # (H*W, Cin), pixels-major (XLU)
    y1 = jnp.dot(x_pm, w1_ref[...], preferred_element_type=jnp.float32)
    y1 = y1 * s1_ref[...] + b1_ref[...]
    y1 = jnp.where(y1 >= 0, y1, NEG_SLOPE * y1)

    # ---- stage 2: depthwise 3x3, stride s, padding 1 ------------------------
    # Zero padding lives in VMEM scratch: zero it, drop y1 into the interior,
    # then accumulate the 9 taps reading directly at the strided output
    # positions (column stride via pl.ds(stride=...), row stride via a cheap
    # leading-dim phase select afterwards).
    ypad_ref[...] = jnp.zeros_like(ypad_ref)
    ypad_ref[1:H + 1, 1:W + 1, :] = y1.reshape(H, W, dw)

    wd = wd_ref[...]                            # (9, dw) = flattened 3x3 taps
    rows = stride * Ho
    acc = jnp.zeros((rows, Wo, dw), jnp.float32)
    for ky in range(3):                         # static 3x3 -> fully unrolled
        for kx in range(3):
            if stride == 1:
                patch = ypad_ref[pl.ds(ky, rows), pl.ds(kx, Wo), :]
            else:
                patch = ypad_ref[pl.ds(ky, rows),
                                 pl.ds(kx, Wo, stride=stride), :]
            k = 3 * ky + kx
            acc = acc + patch * wd[k:k + 1, :]
    if stride > 1:                              # keep output rows 0, s, 2s, ...
        acc = acc.reshape(Ho, stride, Wo, dw)[:, 0]
    y2 = acc.reshape(Ho * Wo, dw)
    y2 = y2 * sd_ref[...] + bd_ref[...]
    y2 = jnp.where(y2 >= 0, y2, NEG_SLOPE * y2)

    # ---- stage 3: 1x1 conv + folded BN (+ residual) -------------------------
    y3 = jnp.dot(y2, w2_ref[...], preferred_element_type=jnp.float32)
    y3 = y3 * s2_ref[...] + b2_ref[...]
    if residual:                                # Cin == Cout and stride == 1
        y3 = y3 + x_pm
    # Store channels-major so the last (lane) dim is Ho*Wo (lane-dense store);
    # the wrapper's final reshape to NCHW is then free.
    o_ref[...] = y3.T.reshape(1, Cout, Ho * Wo).astype(o_ref.dtype)


# ---------------------------------------------------------------------------
# Parameter construction (deterministic) + BN folding (eval mode)
# ---------------------------------------------------------------------------
def _make_bn(key, c):
    k1, k2, k3, k4 = jax.random.split(key, 4)
    gamma = 1.0 + 0.1 * jax.random.normal(k1, (c,), jnp.float32)
    beta = 0.1 * jax.random.normal(k2, (c,), jnp.float32)
    mean = 0.1 * jax.random.normal(k3, (c,), jnp.float32)
    var = 0.5 + jax.random.uniform(k4, (c,), jnp.float32)
    return gamma, beta, mean, var


def _fold_bn(conv_bias, gamma, beta, mean, var):
    scale = gamma / jnp.sqrt(var + BN_EPS)
    bias = (conv_bias - mean) * scale + beta
    return scale, bias


def init_ep_params(key, input_channel, output_channel, expansion=0.5):
    dw_c = int(expansion * input_channel)
    ks = jax.random.split(key, 9)

    def unif(k, shape, fan_in):
        b = 1.0 / jnp.sqrt(jnp.float32(fan_in))
        return jax.random.uniform(k, shape, jnp.float32, -b, b)

    # conv1_1_1: 1x1 conv (Cin -> dw) + BN
    w1 = unif(ks[0], (input_channel, dw_c), input_channel)
    cb1 = unif(ks[1], (dw_c,), input_channel)
    s1, b1 = _fold_bn(cb1, *_make_bn(ks[2], dw_c))

    # dwconv: 3x3 depthwise (groups = dw) + BN
    wd = unif(ks[3], (3, 3, dw_c), 9)
    cbd = unif(ks[4], (dw_c,), 9)
    sd, bd = _fold_bn(cbd, *_make_bn(ks[5], dw_c))

    # conv1_1_2: 1x1 conv (dw -> Cout) + BN (no activation)
    w2 = unif(ks[6], (dw_c, output_channel), dw_c)
    cb2 = unif(ks[7], (output_channel,), dw_c)
    s2, b2 = _fold_bn(cb2, *_make_bn(ks[8], output_channel))

    return dict(
        w1=w1, s1=s1.reshape(1, -1), b1=b1.reshape(1, -1),
        wd=wd, sd=sd.reshape(1, -1), bd=bd.reshape(1, -1),
        w2=w2, s2=s2.reshape(1, -1), b2=b2.reshape(1, -1),
    )


# ---------------------------------------------------------------------------
# Forward (single fused Pallas call) and pure-JAX reference
# ---------------------------------------------------------------------------
def ep_forward(x_nchw, params, *, stride=2):
    assert stride >= 1
    N, Cin, H, W = x_nchw.shape
    dw = params["w1"].shape[1]
    Cout = params["w2"].shape[1]
    Ho = (H - 1) // stride + 1
    Wo = (W - 1) // stride + 1
    # Residual is only shape-valid when the spatial dims are preserved.
    residual = (Cin == Cout) and (stride == 1)

    x_flat = x_nchw.reshape(N, Cin, H * W)      # free row-major view of NCHW
    wd9 = params["wd"].reshape(9, dw)           # free

    kernel = functools.partial(
        _ep_fused_kernel, H=H, W=W, Ho=Ho, Wo=Wo,
        stride=stride, residual=residual)

    out = pl.pallas_call(
        kernel,
        out_shape=jax.ShapeDtypeStruct((N, Cout, Ho * Wo), jnp.float32),
        grid=(N,),
        in_specs=[
            pl.BlockSpec((1, Cin, H * W), lambda n: (n, 0, 0)),
            pl.BlockSpec((Cin, dw), lambda n: (0, 0)),
            pl.BlockSpec((1, dw), lambda n: (0, 0)),
            pl.BlockSpec((1, dw), lambda n: (0, 0)),
            pl.BlockSpec((9, dw), lambda n: (0, 0)),
            pl.BlockSpec((1, dw), lambda n: (0, 0)),
            pl.BlockSpec((1, dw), lambda n: (0, 0)),
            pl.BlockSpec((dw, Cout), lambda n: (0, 0)),
            pl.BlockSpec((1, Cout), lambda n: (0, 0)),
            pl.BlockSpec((1, Cout), lambda n: (0, 0)),
        ],
        out_specs=pl.BlockSpec((1, Cout, Ho * Wo), lambda n: (n, 0, 0)),
        scratch_shapes=[
            pltpu.VMEM((stride * Ho + 2, stride * Wo + 2, dw), jnp.float32),
        ],
        compiler_params=pltpu.CompilerParams(
            dimension_semantics=("parallel",),
            vmem_limit_bytes=32 * 1024 * 1024),
    )(x_flat, params["w1"], params["s1"], params["b1"],
      wd9, params["sd"], params["bd"],
      params["w2"], params["s2"], params["b2"])

    return out.reshape(N, Cout, Ho, Wo)         # free: already channels-first


def ep_reference(x_nchw, params, *, stride=2):
    x = jnp.transpose(x_nchw, (0, 2, 3, 1))
    Cin = params["w1"].shape[0]
    Cout = params["w2"].shape[1]
    dw_c = params["w1"].shape[1]

    y = jnp.einsum("nhwc,cd->nhwd", x, params["w1"]) * params["s1"][0] + params["b1"][0]
    y = jnp.where(y >= 0, y, NEG_SLOPE * y)

    y = lax.conv_general_dilated(
        y, params["wd"].reshape(3, 3, 1, dw_c),
        window_strides=(stride, stride), padding=((1, 1), (1, 1)),
        dimension_numbers=("NHWC", "HWIO", "NHWC"),
        feature_group_count=dw_c)
    y = y * params["sd"][0] + params["bd"][0]
    y = jnp.where(y >= 0, y, NEG_SLOPE * y)

    y = jnp.einsum("nhwc,cd->nhwd", y, params["w2"]) * params["s2"][0] + params["b2"][0]
    if Cin == Cout and stride == 1:
        y = y + x
    return jnp.transpose(y, (0, 3, 1, 2))


# ---------------------------------------------------------------------------
if __name__ == "__main__":
    root = jax.random.PRNGKey(0)
    kx1, kp1, kx2, kp2 = jax.random.split(root, 4)

    # Case 1: EP(input=8, output=16, stride=2)  -> strided dwconv, no residual
    x1 = jax.random.normal(kx1, (2, 8, 16, 16), jnp.float32)
    p1 = init_ep_params(kp1, 8, 16)
    out1 = jax.block_until_ready(ep_forward(x1, p1, stride=2))
    ref1 = ep_reference(x1, p1, stride=2)
    assert out1.shape == (2, 16, 8, 8)
    assert bool(jnp.allclose(out1, ref1, rtol=1e-2, atol=1e-2))

    # Case 2: EP(input=8, output=8, stride=1)   -> residual add exercised
    x2 = jax.random.normal(kx2, (2, 8, 16, 16), jnp.float32)
    p2 = init_ep_params(kp2, 8, 8)
    out2 = jax.block_until_ready(ep_forward(x2, p2, stride=1))
    ref2 = ep_reference(x2, p2, stride=1)
    assert out2.shape == (2, 8, 16, 16)
    assert bool(jnp.allclose(out2, ref2, rtol=1e-2, atol=1e-2))

    print("KERNEL_OK")
</pallas_src>

<mosaic_0001>
module attributes {stable_mosaic.version = 11 : i64} {
  func.func @_ep_fused_kernel(%arg0: i32, %arg1: memref<1x8x256xf32, #tpu.memory_space<vmem>>, %arg2: memref<8x4xf32, #tpu.memory_space<vmem>>, %arg3: memref<1x4xf32, #tpu.memory_space<vmem>>, %arg4: memref<1x4xf32, #tpu.memory_space<vmem>>, %arg5: memref<9x4xf32, #tpu.memory_space<vmem>>, %arg6: memref<1x4xf32, #tpu.memory_space<vmem>>, %arg7: memref<1x4xf32, #tpu.memory_space<vmem>>, %arg8: memref<4x16xf32, #tpu.memory_space<vmem>>, %arg9: memref<1x16xf32, #tpu.memory_space<vmem>>, %arg10: memref<1x16xf32, #tpu.memory_space<vmem>>, %arg11: memref<1x16x64xf32, #tpu.memory_space<vmem>>, %arg12: memref<18x18x4xf32, #tpu.memory_space<vmem>>) attributes {dimension_semantics = [#tpu.dimension_semantics<parallel>], iteration_bounds = array<i64: 2>, scalar_prefetch = 0 : i64, scratch_operands = 1 : i64, tpu.core_type = #tpu.core_type<tc>, window_params = [{transform_indices = @transform_0, window_bounds = array<i64: 1, 8, 256>}, {pipeline_mode = #tpu.pipeline_mode<synchronous>, transform_indices = @transform_1, window_bounds = array<i64: 8, 4>}, {pipeline_mode = #tpu.pipeline_mode<synchronous>, transform_indices = @transform_2, window_bounds = array<i64: 1, 4>}, {pipeline_mode = #tpu.pipeline_mode<synchronous>, transform_indices = @transform_3, window_bounds = array<i64: 1, 4>}, {pipeline_mode = #tpu.pipeline_mode<synchronous>, transform_indices = @transform_4, window_bounds = array<i64: 9, 4>}, {pipeline_mode = #tpu.pipeline_mode<synchronous>, transform_indices = @transform_5, window_bounds = array<i64: 1, 4>}, {pipeline_mode = #tpu.pipeline_mode<synchronous>, transform_indices = @transform_6, window_bounds = array<i64: 1, 4>}, {pipeline_mode = #tpu.pipeline_mode<synchronous>, transform_indices = @transform_7, window_bounds = array<i64: 4, 16>}, {pipeline_mode = #tpu.pipeline_mode<synchronous>, transform_indices = @transform_8, window_bounds = array<i64: 1, 16>}, {pipeline_mode = #tpu.pipeline_mode<synchronous>, transform_indices = @transform_9, window_bounds = array<i64: 1, 16>}, {transform_indices = @transform_10, window_bounds = array<i64: 1, 16, 64>}]} {
    %c0 = arith.constant 0 : index
    %c0_0 = arith.constant 0 : index
    %c0_1 = arith.constant 0 : index
    %0 = vector.load %arg1[%c0, %c0_0, %c0_1] : memref<1x8x256xf32, #tpu.memory_space<vmem>>, vector<1x8x256xf32>
    %1 = vector.shape_cast %0 : vector<1x8x256xf32> to vector<8x256xf32>
    %2 = tpu.transpose %1, [1, 0] : vector<8x256xf32> -> vector<256x8xf32>
    %c0_2 = arith.constant 0 : index
    %c0_3 = arith.constant 0 : index
    %3 = vector.load %arg2[%c0_2, %c0_3] : memref<8x4xf32, #tpu.memory_space<vmem>>, vector<8x4xf32>
    %cst = arith.constant dense<0.000000e+00> : vector<256x4xf32>
    %4 = tpu.matmul %2, %3, %cst {dimension_numbers = #tpu.dot_dimension_numbers<[1], [0], [0], [1], [0, 0, 1, 1], [], []>} : vector<256x8xf32>, vector<8x4xf32>, vector<256x4xf32> -> vector<256x4xf32>
    %c0_4 = arith.constant 0 : index
    %c0_5 = arith.constant 0 : index
    %5 = vector.load %arg3[%c0_4, %c0_5] : memref<1x4xf32, #tpu.memory_space<vmem>>, vector<1x4xf32>
    %6 = vector.broadcast %5 : vector<1x4xf32> to vector<256x4xf32>
    %7 = arith.mulf %4, %6 : vector<256x4xf32>
    %c0_6 = arith.constant 0 : index
    %c0_7 = arith.constant 0 : index
    %8 = vector.load %arg4[%c0_6, %c0_7] : memref<1x4xf32, #tpu.memory_space<vmem>>, vector<1x4xf32>
    %9 = vector.broadcast %8 : vector<1x4xf32> to vector<256x4xf32>
    %10 = arith.addf %7, %9 : vector<256x4xf32>
    %cst_8 = arith.constant 0.000000e+00 : f32
    %11 = vector.broadcast %cst_8 : f32 to vector<256x4xf32>
    %12 = arith.cmpf oge, %10, %11 : vector<256x4xf32>
    %cst_9 = arith.constant 0.00999999977 : f32
    %13 = vector.broadcast %cst_9 : f32 to vector<256x4xf32>
    %14 = arith.mulf %13, %10 : vector<256x4xf32>
    %15 = arith.select %12, %10, %14 : vector<256x4xi1>, vector<256x4xf32>
    %cst_10 = arith.constant 0.000000e+00 : f32
    %16 = vector.broadcast %cst_10 : f32 to vector<18x18x4xf32>
    %c0_11 = arith.constant 0 : index
    %c0_12 = arith.constant 0 : index
    %c0_13 = arith.constant 0 : index
    %17 = vector.load %arg12[%c0_11, %c0_12, %c0_13] : memref<18x18x4xf32, #tpu.memory_space<vmem>>, vector<18x18x4xf32>
    tpu.vector_store %arg12[%c0_11, %c0_12, %c0_13], %16 {strides = array<i32>} : memref<18x18x4xf32, #tpu.memory_space<vmem>>, vector<18x18x4xf32>,
    %18 = vector.shape_cast %15 : vector<256x4xf32> to vector<16x16x4xf32>
    %c1 = arith.constant 1 : index
    %c1_14 = arith.constant 1 : index
    %c0_15 = arith.constant 0 : index
    %19 = vector.load %arg12[%c1, %c1_14, %c0_15] : memref<18x18x4xf32, #tpu.memory_space<vmem>>, vector<16x16x4xf32>
    tpu.vector_store %arg12[%c1, %c1_14, %c0_15], %18 {strides = array<i32>} : memref<18x18x4xf32, #tpu.memory_space<vmem>>, vector<16x16x4xf32>,
    %c0_16 = arith.constant 0 : index
    %c0_17 = arith.constant 0 : index
    %20 = vector.load %arg5[%c0_16, %c0_17] : memref<9x4xf32, #tpu.memory_space<vmem>>, vector<9x4xf32>
    %cst_18 = arith.constant 0.000000e+00 : f32
    %21 = vector.broadcast %cst_18 : f32 to vector<16x8x4xf32>
    %c0_19 = arith.constant 0 : index
    %c0_20 = arith.constant 0 : index
    %c0_21 = arith.constant 0 : index
    %22 = tpu.strided_load %arg12[%c0_19, %c0_20, %c0_21] {strides = array<i32: 1, 2, 1>} : memref<18x18x4xf32, #tpu.memory_space<vmem>>, vector<16x8x4xf32>
    %23 = vector.extract_strided_slice %20 {offsets = [0, 0], sizes = [1, 4], strides = [1, 1]} : vector<9x4xf32> to vector<1x4xf32>
    %24 = vector.shape_cast %23 : vector<1x4xf32> to vector<1x1x4xf32>
    %25 = vector.broadcast %24 : vector<1x1x4xf32> to vector<16x8x4xf32>
    %26 = arith.mulf %22, %25 : vector<16x8x4xf32>
    %27 = arith.addf %21, %26 : vector<16x8x4xf32>
    %c0_22 = arith.constant 0 : index
    %c1_23 = arith.constant 1 : index
    %c0_24 = arith.constant 0 : index
    %28 = tpu.strided_load %arg12[%c0_22, %c1_23, %c0_24] {strides = array<i32: 1, 2, 1>} : memref<18x18x4xf32, #tpu.memory_space<vmem>>, vector<16x8x4xf32>
    %29 = vector.extract_strided_slice %20 {offsets = [1, 0], sizes = [1, 4], strides = [1, 1]} : vector<9x4xf32> to vector<1x4xf32>
    %30 = vector.shape_cast %29 : vector<1x4xf32> to vector<1x1x4xf32>
    %31 = vector.broadcast %30 : vector<1x1x4xf32> to vector<16x8x4xf32>
    %32 = arith.mulf %28, %31 : vector<16x8x4xf32>
    %33 = arith.addf %27, %32 : vector<16x8x4xf32>
    %c0_25 = arith.constant 0 : index
    %c2 = arith.constant 2 : index
    %c0_26 = arith.constant 0 : index
    %34 = tpu.strided_load %arg12[%c0_25, %c2, %c0_26] {strides = array<i32: 1, 2, 1>} : memref<18x18x4xf32, #tpu.memory_space<vmem>>, vector<16x8x4xf32>
    %35 = vector.extract_strided_slice %20 {offsets = [2, 0], sizes = [1, 4], strides = [1, 1]} : vector<9x4xf32> to vector<1x4xf32>
    %36 = vector.shape_cast %35 : vector<1x4xf32> to vector<1x1x4xf32>
    %37 = vector.broadcast %36 : vector<1x1x4xf32> to vector<16x8x4xf32>
    %38 = arith.mulf %34, %37 : vector<16x8x4xf32>
    %39 = arith.addf %33, %38 : vector<16x8x4xf32>
    %c1_27 = arith.constant 1 : index
    %c0_28 = arith.constant 0 : index
    %c0_29 = arith.constant 0 : index
    %40 = tpu.strided_load %arg12[%c1_27, %c0_28, %c0_29] {strides = array<i32: 1, 2, 1>} : memref<18x18x4xf32, #tpu.memory_space<vmem>>, vector<16x8x4xf32>
    %41 = vector.extract_strided_slice %20 {offsets = [3, 0], sizes = [1, 4], strides = [1, 1]} : vector<9x4xf32> to vector<1x4xf32>
    %42 = vector.shape_cast %41 : vector<1x4xf32> to vector<1x1x4xf32>
    %43 = vector.broadcast %42 : vector<1x1x4xf32> to vector<16x8x4xf32>
    %44 = arith.mulf %40, %43 : vector<16x8x4xf32>
    %45 = arith.addf %39, %44 : vector<16x8x4xf32>
    %c1_30 = arith.constant 1 : index
    %c1_31 = arith.constant 1 : index
    %c0_32 = arith.constant 0 : index
    %46 = tpu.strided_load %arg12[%c1_30, %c1_31, %c0_32] {strides = array<i32: 1, 2, 1>} : memref<18x18x4xf32, #tpu.memory_space<vmem>>, vector<16x8x4xf32>
    %47 = vector.extract_strided_slice %20 {offsets = [4, 0], sizes = [1, 4], strides = [1, 1]} : vector<9x4xf32> to vector<1x4xf32>
    %48 = vector.shape_cast %47 : vector<1x4xf32> to vector<1x1x4xf32>
    %49 = vector.broadcast %48 : vector<1x1x4xf32> to vector<16x8x4xf32>
    %50 = arith.mulf %46, %49 : vector<16x8x4xf32>
    %51 = arith.addf %45, %50 : vector<16x8x4xf32>
    %c1_33 = arith.constant 1 : index
    %c2_34 = arith.constant 2 : index
    %c0_35 = arith.constant 0 : index
    %52 = tpu.strided_load %arg12[%c1_33, %c2_34, %c0_35] {strides = array<i32: 1, 2, 1>} : memref<18x18x4xf32, #tpu.memory_space<vmem>>, vector<16x8x4xf32>
    %53 = vector.extract_strided_slice %20 {offsets = [5, 0], sizes = [1, 4], strides = [1, 1]} : vector<9x4xf32> to vector<1x4xf32>
    %54 = vector.shape_cast %53 : vector<1x4xf32> to vector<1x1x4xf32>
    %55 = vector.broadcast %54 : vector<1x1x4xf32> to vector<16x8x4xf32>
    %56 = arith.mulf %52, %55 : vector<16x8x4xf32>
    %57 = arith.addf %51, %56 : vector<16x8x4xf32>
    %c2_36 = arith.constant 2 : index
    %c0_37 = arith.constant 0 : index
    %c0_38 = arith.constant 0 : index
    %58 = tpu.strided_load %arg12[%c2_36, %c0_37, %c0_38] {strides = array<i32: 1, 2, 1>} : memref<18x18x4xf32, #tpu.memory_space<vmem>>, vector<16x8x4xf32>
    %59 = vector.extract_strided_slice %20 {offsets = [6, 0], sizes = [1, 4], strides = [1, 1]} : vector<9x4xf32> to vector<1x4xf32>
    %60 = vector.shape_cast %59 : vector<1x4xf32> to vector<1x1x4xf32>
    %61 = vector.broadcast %60 : vector<1x1x4xf32> to vector<16x8x4xf32>
    %62 = arith.mulf %58, %61 : vector<16x8x4xf32>
    %63 = arith.addf %57, %62 : vector<16x8x4xf32>
    %c2_39 = arith.constant 2 : index
    %c1_40 = arith.constant 1 : index
    %c0_41 = arith.constant 0 : index
    %64 = tpu.strided_load %arg12[%c2_39, %c1_40, %c0_41] {strides = array<i32: 1, 2, 1>} : memref<18x18x4xf32, #tpu.memory_space<vmem>>, vector<16x8x4xf32>
    %65 = vector.extract_strided_slice %20 {offsets = [7, 0], sizes = [1, 4], strides = [1, 1]} : vector<9x4xf32> to vector<1x4xf32>
    %66 = vector.shape_cast %65 : vector<1x4xf32> to vector<1x1x4xf32>
    %67 = vector.broadcast %66 : vector<1x1x4xf32> to vector<16x8x4xf32>
    %68 = arith.mulf %64, %67 : vector<16x8x4xf32>
    %69 = arith.addf %63, %68 : vector<16x8x4xf32>
    %c2_42 = arith.constant 2 : index
    %c2_43 = arith.constant 2 : index
    %c0_44 = arith.constant 0 : index
    %70 = tpu.strided_load %arg12[%c2_42, %c2_43, %c0_44] {strides = array<i32: 1, 2, 1>} : memref<18x18x4xf32, #tpu.memory_space<vmem>>, vector<16x8x4xf32>
    %71 = vector.extract_strided_slice %20 {offsets = [8, 0], sizes = [1, 4], strides = [1, 1]} : vector<9x4xf32> to vector<1x4xf32>
    %72 = vector.shape_cast %71 : vector<1x4xf32> to vector<1x1x4xf32>
    %73 = vector.broadcast %72 : vector<1x1x4xf32> to vector<16x8x4xf32>
    %74 = arith.mulf %70, %73 : vector<16x8x4xf32>
    %75 = arith.addf %69, %74 : vector<16x8x4xf32>
    %76 = vector.shape_cast %75 : vector<16x8x4xf32> to vector<8x2x8x4xf32>
    %77 = vector.extract_strided_slice %76 {offsets = [0, 0, 0, 0], sizes = [8, 1, 8, 4], strides = [1, 1, 1, 1]} : vector<8x2x8x4xf32> to vector<8x1x8x4xf32>
    %78 = vector.shape_cast %77 : vector<8x1x8x4xf32> to vector<8x8x4xf32>
    %79 = vector.shape_cast %78 : vector<8x8x4xf32> to vector<64x4xf32>
    %c0_45 = arith.constant 0 : index
    %c0_46 = arith.constant 0 : index
    %80 = vector.load %arg6[%c0_45, %c0_46] : memref<1x4xf32, #tpu.memory_space<vmem>>, vector<1x4xf32>
    %81 = vector.broadcast %80 : vector<1x4xf32> to vector<64x4xf32>
    %82 = arith.mulf %79, %81 : vector<64x4xf32>
    %c0_47 = arith.constant 0 : index
    %c0_48 = arith.constant 0 : index
    %83 = vector.load %arg7[%c0_47, %c0_48] : memref<1x4xf32, #tpu.memory_space<vmem>>, vector<1x4xf32>
    %84 = vector.broadcast %83 : vector<1x4xf32> to vector<64x4xf32>
    %85 = arith.addf %82, %84 : vector<64x4xf32>
    %cst_49 = arith.constant 0.000000e+00 : f32
    %86 = vector.broadcast %cst_49 : f32 to vector<64x4xf32>
    %87 = arith.cmpf oge, %85, %86 : vector<64x4xf32>
    %cst_50 = arith.constant 0.00999999977 : f32
    %88 = vector.broadcast %cst_50 : f32 to vector<64x4xf32>
    %89 = arith.mulf %88, %85 : vector<64x4xf32>
    %90 = arith.select %87, %85, %89 : vector<64x4xi1>, vector<64x4xf32>
    %c0_51 = arith.constant 0 : index
    %c0_52 = arith.constant 0 : index
    %91 = vector.load %arg8[%c0_51, %c0_52] : memref<4x16xf32, #tpu.memory_space<vmem>>, vector<4x16xf32>
    %cst_53 = arith.constant dense<0.000000e+00> : vector<64x16xf32>
    %92 = tpu.matmul %90, %91, %cst_53 {dimension_numbers = #tpu.dot_dimension_numbers<[1], [0], [0], [1], [0, 0, 1, 1], [], []>} : vector<64x4xf32>, vector<4x16xf32>, vector<64x16xf32> -> vector<64x16xf32>
    %c0_54 = arith.constant 0 : index
    %c0_55 = arith.constant 0 : index
    %93 = vector.load %arg9[%c0_54, %c0_55] : memref<1x16xf32, #tpu.memory_space<vmem>>, vector<1x16xf32>
    %94 = vector.broadcast %93 : vector<1x16xf32> to vector<64x16xf32>
    %95 = arith.mulf %92, %94 : vector<64x16xf32>
    %c0_56 = arith.constant 0 : index
    %c0_57 = arith.constant 0 : index
    %96 = vector.load %arg10[%c0_56, %c0_57] : memref<1x16xf32, #tpu.memory_space<vmem>>, vector<1x16xf32>
    %97 = vector.broadcast %96 : vector<1x16xf32> to vector<64x16xf32>
    %98 = arith.addf %95, %97 : vector<64x16xf32>
    %99 = tpu.transpose %98, [1, 0] : vector<64x16xf32> -> vector<16x64xf32>
    %100 = vector.shape_cast %99 : vector<16x64xf32> to vector<1x16x64xf32>
    %c0_58 = arith.constant 0 : index
    %c0_59 = arith.constant 0 : index
    %c0_60 = arith.constant 0 : index
    %101 = vector.load %arg11[%c0_58, %c0_59, %c0_60] : memref<1x16x64xf32, #tpu.memory_space<vmem>>, vector<1x16x64xf32>
    tpu.vector_store %arg11[%c0_58, %c0_59, %c0_60], %100 {strides = array<i32>} : memref<1x16x64xf32, #tpu.memory_space<vmem>>, vector<1x16x64xf32>,
    return
  }
  func.func @transform_0(%arg0: i32) -> (i32, i32, i32) {
    %c0_i32 = arith.constant 0 : i32
    %c0_i32_0 = arith.constant 0 : i32
    %c0_i32_1 = arith.constant 0 : i32
    return %arg0, %c0_i32, %c0_i32_0 : i32, i32, i32
  }
  func.func @transform_1(%arg0: i32) -> (i32, i32) {
    %c0_i32 = arith.constant 0 : i32
    %c0_i32_0 = arith.constant 0 : i32
    %c0_i32_1 = arith.constant 0 : i32
    return %c0_i32, %c0_i32_0 : i32, i32
  }
  func.func @transform_2(%arg0: i32) -> (i32, i32) {
    %c0_i32 = arith.constant 0 : i32
    %c0_i32_0 = arith.constant 0 : i32
    %c0_i32_1 = arith.constant 0 : i32
    return %c0_i32, %c0_i32_0 : i32, i32
  }
  func.func @transform_3(%arg0: i32) -> (i32, i32) {
    %c0_i32 = arith.constant 0 : i32
    %c0_i32_0 = arith.constant 0 : i32
    %c0_i32_1 = arith.constant 0 : i32
    return %c0_i32, %c0_i32_0 : i32, i32
  }
  func.func @transform_4(%arg0: i32) -> (i32, i32) {
    %c0_i32 = arith.constant 0 : i32
    %c0_i32_0 = arith.constant 0 : i32
    %c0_i32_1 = arith.constant 0 : i32
    return %c0_i32, %c0_i32_0 : i32, i32
  }
  func.func @transform_5(%arg0: i32) -> (i32, i32) {
    %c0_i32 = arith.constant 0 : i32
    %c0_i32_0 = arith.constant 0 : i32
    %c0_i32_1 = arith.constant 0 : i32
    return %c0_i32, %c0_i32_0 : i32, i32
  }
  func.func @transform_6(%arg0: i32) -> (i32, i32) {
    %c0_i32 = arith.constant 0 : i32
    %c0_i32_0 = arith.constant 0 : i32
    %c0_i32_1 = arith.constant 0 : i32
    return %c0_i32, %c0_i32_0 : i32, i32
  }
  func.func @transform_7(%arg0: i32) -> (i32, i32) {
    %c0_i32 = arith.constant 0 : i32
    %c0_i32_0 = arith.constant 0 : i32
    %c0_i32_1 = arith.constant 0 : i32
    return %c0_i32, %c0_i32_0 : i32, i32
  }
  func.func @transform_8(%arg0: i32) -> (i32, i32) {
    %c0_i32 = arith.constant 0 : i32
    %c0_i32_0 = arith.constant 0 : i32
    %c0_i32_1 = arith.constant 0 : i32
    return %c0_i32, %c0_i32_0 : i32, i32
  }
  func.func @transform_9(%arg0: i32) -> (i32, i32) {
    %c0_i32 = arith.constant 0 : i32
    %c0_i32_0 = arith.constant 0 : i32
    %c0_i32_1 = arith.constant 0 : i32
    return %c0_i32, %c0_i32_0 : i32, i32
  }
  func.func @transform_10(%arg0: i32) -> (i32, i32, i32) {
    %c0_i32 = arith.constant 0 : i32
    %c0_i32_0 = arith.constant 0 : i32
    %c0_i32_1 = arith.constant 0 : i32
    return %arg0, %c0_i32, %c0_i32_0 : i32, i32, i32
  }
}

</mosaic_0001>

<llo_original>
// kernel: tpu_custom_call.1
$region0: #{tpu_custom_call.1}
  #allocation0 [shape = 'u32[]', space=smem, size = 0x4, offset = 0x4, fixed_abs, tag = 'smem constant byte address 0x4 - core index']
  #allocation1 [shape = 'u32[144,128]{1,0:T(1,128)}', space=vmem, size = 0x12000, scoped, tag = 'internal scratch']
  #allocation2 [shape = 'f32[18,18,4]{2,1,0:T(8,128)}', space=vmem, size = 0x36000, scoped, tag = 'scratch operand']
  %s0 = inlined_call_operand.hbm [shape: f32[2,8,256], index: 0, kind: input, shape index: {}]
  %s1 = inlined_call_operand.vmem [shape: f32[8,4], index: 1, kind: input, shape index: {}]
  %s2 = inlined_call_operand.vmem [shape: f32[1,4], index: 2, kind: input, shape index: {}]
  %s3 = inlined_call_operand.vmem [shape: f32[1,4], index: 3, kind: input, shape index: {}]
  %s4 = inlined_call_operand.vmem [shape: f32[9,4], index: 4, kind: input, shape index: {}]
  %s5 = inlined_call_operand.vmem [shape: f32[1,4], index: 5, kind: input, shape index: {}]
  %s6 = inlined_call_operand.vmem [shape: f32[1,4], index: 6, kind: input, shape index: {}]
  %s7 = inlined_call_operand.vmem [shape: f32[4,16], index: 7, kind: input, shape index: {}]
  %s8 = inlined_call_operand.vmem [shape: f32[1,16], index: 8, kind: input, shape index: {}]
  %s9 = inlined_call_operand.vmem [shape: f32[1,16], index: 9, kind: input, shape index: {}]
  %s10 = inlined_call_operand.hbm [shape: f32[2,16,64], index: 10, kind: output, shape index: {}]
  %s11 = sld [smem:[#allocation0]]
  $region77: #{tpu_custom_call.1} parent=0
    _
  %s13 = ssub.s32 1, %s11
  %s14 = scalar_select 0, %s13, %s11
  $region1: #{tpu_custom_call.1} parent=0
    #allocation3 [shape = 'u8[16384]{0}', space=vmem, size = 0x4000, scoped, tag = 'input window, operand 0']
    #allocation4 [shape = 's32[2]{0}', space=sflag, size = 0x8, scoped, tag = 'scoped memory for tpu_custom_call.1']
    #allocation5 [shape = 's32[2]{0}', space=sflag, size = 0x8, scoped, tag = 'scoped memory for tpu_custom_call.1']
    #allocation6 [shape = 'u8[16384]{0}', space=vmem, size = 0x4000, scoped, tag = 'output window, operand 0']
    %15 = vsyncpa [#allocation4], 0
    %s16 = scalar_lea.sflag [#allocation4], 1
    %17 = vsyncpa %s16, 0
    %18 = vsyncpa [#allocation5], 0
    %s19 = scalar_lea.sflag [#allocation5], 1
    %20 = vsyncpa %s19, 0
    loop: start=0, step=1, limit=4
    $region2: #{tpu_custom_call.1} parent=1 // loop_pre_header
      _
    $region3: #{tpu_custom_call.1} parent=1 // loop_header
      %s22 = sphi 0, %s26
      %p23 = scmp.ge.s32.totalorder %s22, 4
      %s32 = sphi 0, %s34
      %s35 = sphi 0, %s32
      %s36 = sphi 0, %s35
      %s52 = sphi 0, %s36
      %s56 = sphi 0, %s56
      %s58 = sphi 0, %s56
      %s59 = sphi 0, %s58
      %s73 = sphi 0, %s59
      %s77 = sphi 0, %s77
      %s79 = sphi 0, %s77
      %s80 = sphi 0, %s79
      %s94 = sphi 0, %s80
      %s98 = sphi 0, %s98
      %s100 = sphi 0, %s98
      %s101 = sphi 0, %s100
      %s115 = sphi 0, %s101
      %s119 = sphi 0, %s119
      %s121 = sphi 0, %s119
      %s122 = sphi 0, %s121
      %s136 = sphi 0, %s122
      %s140 = sphi 0, %s140
      %s142 = sphi 0, %s140
      %s143 = sphi 0, %s142
      %s157 = sphi 0, %s143
      %s161 = sphi 0, %s161
      %s163 = sphi 0, %s161
      %s164 = sphi 0, %s163
      %s178 = sphi 0, %s164
      %s182 = sphi 0, %s182
      %s184 = sphi 0, %s182
      %s185 = sphi 0, %s184
      %s199 = sphi 0, %s185
      %s203 = sphi 0, %s203
      %s205 = sphi 0, %s203
      %s206 = sphi 0, %s205
      %s220 = sphi 0, %s206
      %s224 = sphi 0, %s224
      %s226 = sphi 0, %s224
      %s227 = sphi 0, %s226
      %s241 = sphi 0, %s227
      %s247 = sphi 0, %s249
      %s250 = sphi 0, %s247
      %s251 = sphi 0, %s250
      %s267 = sphi 0, %s251
    $region4: #{tpu_custom_call.1} parent=1 // loop_header_branch
      %25 = sbr.rel (%p23) target = $region8
    $region5: #{tpu_custom_call.1} parent=1 // loop_body
      %s27 = ssub.s32 %s22, 1
      %s28 = ssub.s32 %s22, 2
      %s29 = sadd.s32 %s22, 1
      %s30 = ssub.s32 %s22, %s29
      %p31 = scmp.eq.s32.totalorder %s30, 0
      %s33 = sadd.s32 %s32, 1
      %s34 = scalar_select %p31, %s32, %s33
      %p37 = pneg %p31
      %p38 = scmp.eq.s32.totalorder %s22, 1
      %p39 = por %p37, %p38
      %p40 = scmp.ne.s32.totalorder %s32, %s35
      %p41 = scmp.eq.s32.totalorder %s22, 0
      %p42 = por %p40, %p41
      %p43 = scmp.ne.s32.totalorder %s32, %s35
      %p44 = scmp.eq.s32.totalorder %s27, 1
      %p45 = por %p43, %p44
      %p46 = scmp.ne.s32.totalorder %s35, %s36
      %p47 = scmp.eq.s32.totalorder %s27, 0
      %p48 = por %p46, %p47
      %p49 = scmp.ne.s32.totalorder %s35, %s36
      %p50 = scmp.eq.s32.totalorder %s28, 1
      %p51 = por %p49, %p50
      %p53 = scmp.ne.s32.totalorder %s36, %s52
      %p54 = scmp.eq.s32.totalorder %s28, 0
      %p55 = por %p53, %p54
      %s57 = sadd.s32 %s56, 1
      %p60 = scmp.eq.s32.totalorder %s22, 1
      %p61 = scmp.ne.s32.totalorder %s56, %s58
      %p62 = scmp.eq.s32.totalorder %s22, 0
      %p63 = por %p61, %p62
      %p64 = scmp.ne.s32.totalorder %s56, %s58
      %p65 = scmp.eq.s32.totalorder %s27, 1
      %p66 = por %p64, %p65
      %p67 = scmp.ne.s32.totalorder %s58, %s59
      %p68 = scmp.eq.s32.totalorder %s27, 0
      %p69 = por %p67, %p68
      %p70 = scmp.ne.s32.totalorder %s58, %s59
      %p71 = scmp.eq.s32.totalorder %s28, 1
      %p72 = por %p70, %p71
      %p74 = scmp.ne.s32.totalorder %s59, %s73
      %p75 = scmp.eq.s32.totalorder %s28, 0
      %p76 = por %p74, %p75
      %s78 = sadd.s32 %s77, 1
      %p81 = scmp.eq.s32.totalorder %s22, 1
      %p82 = scmp.ne.s32.totalorder %s77, %s79
      %p83 = scmp.eq.s32.totalorder %s22, 0
      %p84 = por %p82, %p83
      %p85 = scmp.ne.s32.totalorder %s77, %s79
      %p86 = scmp.eq.s32.totalorder %s27, 1
      %p87 = por %p85, %p86
      %p88 = scmp.ne.s32.totalorder %s79, %s80
      %p89 = scmp.eq.s32.totalorder %s27, 0
      %p90 = por %p88, %p89
      %p91 = scmp.ne.s32.totalorder %s79, %s80
      %p92 = scmp.eq.s32.totalorder %s28, 1
      %p93 = por %p91, %p92
      %p95 = scmp.ne.s32.totalorder %s80, %s94
      %p96 = scmp.eq.s32.totalorder %s28, 0
      %p97 = por %p95, %p96
      %s99 = sadd.s32 %s98, 1
      %p102 = scmp.eq.s32.totalorder %s22, 1
      %p103 = scmp.ne.s32.totalorder %s98, %s100
      %p104 = scmp.eq.s32.totalorder %s22, 0
      %p105 = por %p103, %p104
      %p106 = scmp.ne.s32.totalorder %s98, %s100
      %p107 = scmp.eq.s32.totalorder %s27, 1
      %p108 = por %p106, %p107
      %p109 = scmp.ne.s32.totalorder %s100, %s101
      %p110 = scmp.eq.s32.totalorder %s27, 0
      %p111 = por %p109, %p110
      %p112 = scmp.ne.s32.totalorder %s100, %s101
      %p113 = scmp.eq.s32.totalorder %s28, 1
      %p114 = por %p112, %p113
      %p116 = scmp.ne.s32.totalorder %s101, %s115
      %p117 = scmp.eq.s32.totalorder %s28, 0
      %p118 = por %p116, %p117
      %s120 = sadd.s32 %s119, 1
      %p123 = scmp.eq.s32.totalorder %s22, 1
      %p124 = scmp.ne.s32.totalorder %s119, %s121
      %p125 = scmp.eq.s32.totalorder %s22, 0
      %p126 = por %p124, %p125
      %p127 = scmp.ne.s32.totalorder %s119, %s121
      %p128 = scmp.eq.s32.totalorder %s27, 1
      %p129 = por %p127, %p128
      %p130 = scmp.ne.s32.totalorder %s121, %s122
      %p131 = scmp.eq.s32.totalorder %s27, 0
      %p132 = por %p130, %p131
      %p133 = scmp.ne.s32.totalorder %s121, %s122
      %p134 = scmp.eq.s32.totalorder %s28, 1
      %p135 = por %p133, %p134
      %p137 = scmp.ne.s32.totalorder %s122, %s136
      %p138 = scmp.eq.s32.totalorder %s28, 0
      %p139 = por %p137, %p138
      %s141 = sadd.s32 %s140, 1
      %p144 = scmp.eq.s32.totalorder %s22, 1
      %p145 = scmp.ne.s32.totalorder %s140, %s142
      %p146 = scmp.eq.s32.totalorder %s22, 0
      %p147 = por %p145, %p146
      %p148 = scmp.ne.s32.totalorder %s140, %s142
      %p149 = scmp.eq.s32.totalorder %s27, 1
      %p150 = por %p148, %p149
      %p151 = scmp.ne.s32.totalorder %s142, %s143
      %p152 = scmp.eq.s32.totalorder %s27, 0
      %p153 = por %p151, %p152
      %p154 = scmp.ne.s32.totalorder %s142, %s143
      %p155 = scmp.eq.s32.totalorder %s28, 1
      %p156 = por %p154, %p155
      %p158 = scmp.ne.s32.totalorder %s143, %s157
      %p159 = scmp.eq.s32.totalorder %s28, 0
      %p160 = por %p158, %p159
      %s162 = sadd.s32 %s161, 1
      %p165 = scmp.eq.s32.totalorder %s22, 1
      %p166 = scmp.ne.s32.totalorder %s161, %s163
      %p167 = scmp.eq.s32.totalorder %s22, 0
      %p168 = por %p166, %p167
      %p169 = scmp.ne.s32.totalorder %s161, %s163
      %p170 = scmp.eq.s32.totalorder %s27, 1
      %p171 = por %p169, %p170
      %p172 = scmp.ne.s32.totalorder %s163, %s164
      %p173 = scmp.eq.s32.totalorder %s27, 0
      %p174 = por %p172, %p173
      %p175 = scmp.ne.s32.totalorder %s163, %s164
      %p176 = scmp.eq.s32.totalorder %s28, 1
      %p177 = por %p175, %p176
      %p179 = scmp.ne.s32.totalorder %s164, %s178
      %p180 = scmp.eq.s32.totalorder %s28, 0
      %p181 = por %p179, %p180
      %s183 = sadd.s32 %s182, 1
      %p186 = scmp.eq.s32.totalorder %s22, 1
      %p187 = scmp.ne.s32.totalorder %s182, %s184
      %p188 = scmp.eq.s32.totalorder %s22, 0
      %p189 = por %p187, %p188
      %p190 = scmp.ne.s32.totalorder %s182, %s184
      %p191 = scmp.eq.s32.totalorder %s27, 1
      %p192 = por %p190, %p191
      %p193 = scmp.ne.s32.totalorder %s184, %s185
      %p194 = scmp.eq.s32.totalorder %s27, 0
      %p195 = por %p193, %p194
      %p196 = scmp.ne.s32.totalorder %s184, %s185
      %p197 = scmp.eq.s32.totalorder %s28, 1
      %p198 = por %p196, %p197
      %p200 = scmp.ne.s32.totalorder %s185, %s199
      %p201 = scmp.eq.s32.totalorder %s28, 0
      %p202 = por %p200, %p201
      %s204 = sadd.s32 %s203, 1
      %p207 = scmp.eq.s32.totalorder %s22, 1
      %p208 = scmp.ne.s32.totalorder %s203, %s205
      %p209 = scmp.eq.s32.totalorder %s22, 0
      %p210 = por %p208, %p209
      %p211 = scmp.ne.s32.totalorder %s203, %s205
      %p212 = scmp.eq.s32.totalorder %s27, 1
      %p213 = por %p211, %p212
      %p214 = scmp.ne.s32.totalorder %s205, %s206
      %p215 = scmp.eq.s32.totalorder %s27, 0
      %p216 = por %p214, %p215
      %p217 = scmp.ne.s32.totalorder %s205, %s206
      %p218 = scmp.eq.s32.totalorder %s28, 1
      %p219 = por %p217, %p218
      %p221 = scmp.ne.s32.totalorder %s206, %s220
      %p222 = scmp.eq.s32.totalorder %s28, 0
      %p223 = por %p221, %p222
      %s225 = sadd.s32 %s224, 1
      %p228 = scmp.eq.s32.totalorder %s22, 1
      %p229 = scmp.ne.s32.totalorder %s224, %s226
      %p230 = scmp.eq.s32.totalorder %s22, 0
      %p231 = por %p229, %p230
      %p232 = scmp.ne.s32.totalorder %s224, %s226
      %p233 = scmp.eq.s32.totalorder %s27, 1
      %p234 = por %p232, %p233
      %p235 = scmp.ne.s32.totalorder %s226, %s227
      %p236 = scmp.eq.s32.totalorder %s27, 0
      %p237 = por %p235, %p236
      %p238 = scmp.ne.s32.totalorder %s226, %s227
      %p239 = scmp.eq.s32.totalorder %s28, 1
      %p240 = por %p238, %p239
      %p242 = scmp.ne.s32.totalorder %s227, %s241
      %p243 = scmp.eq.s32.totalorder %s28, 0
      %p244 = por %p242, %p243
      %s245 = ssub.s32 %s22, %s29
      %p246 = scmp.eq.s32.totalorder %s245, 0
      %s248 = sadd.s32 %s247, 1
      %s249 = scalar_select %p246, %s247, %s248
      %p252 = pneg %p246
      %p253 = scmp.eq.s32.totalorder %s22, 1
      %p254 = por %p252, %p253
      %p255 = scmp.ne.s32.totalorder %s247, %s250
      %p256 = scmp.eq.s32.totalorder %s22, 0
      %p257 = por %p255, %p256
      %p258 = scmp.ne.s32.totalorder %s247, %s250
      %p259 = scmp.eq.s32.totalorder %s27, 1
      %p260 = por %p258, %p259
      %p261 = scmp.ne.s32.totalorder %s250, %s251
      %p262 = scmp.eq.s32.totalorder %s27, 0
      %p263 = por %p261, %p262
      %p264 = scmp.ne.s32.totalorder %s250, %s251
      %p265 = scmp.eq.s32.totalorder %s28, 1
      %p266 = por %p264, %p265
      %p268 = scmp.ne.s32.totalorder %s251, %s267
      %p269 = scmp.eq.s32.totalorder %s28, 0
      %p270 = por %p268, %p269
      %p271 = scmp.le.s32.totalorder 1, %s22
      %p272 = scmp.lt.s32.totalorder %s22, 3
      %p273 = pnand %p271, %p272
      %p274 = pneg %p273
      // Predicated region
      $region9: #{tpu_custom_call.1} parent=5 // pred_check
        _
      $region10: #{tpu_custom_call.1} parent=5 // pred_check_branch
        %276 = sbr.rel (%p273) target = $region12
      $region11: #{tpu_custom_call.1} parent=5 // pred_region
        %s277 = ssub.s32 %s22, 1
        // Predicated region
        $region13: #{tpu_custom_call.1} parent=11 // pred_check
          %p278 = pneg %p69
        $region14: #{tpu_custom_call.1} parent=11 // pred_check_branch
          %280 = sbr.rel (%p278) target = $region16
        $region15: #{tpu_custom_call.1} parent=11 // pred_region
          _
        $region16: #{tpu_custom_call.1} parent=11 // pred_fallthru
          _
        // Predicated region
        $region17: #{tpu_custom_call.1} parent=11 // pred_check
          %p281 = pneg %p90
        $region18: #{tpu_custom_call.1} parent=11 // pred_check_branch
          %283 = sbr.rel (%p281) target = $region20
        $region19: #{tpu_custom_call.1} parent=11 // pred_region
          _
        $region20: #{tpu_custom_call.1} parent=11 // pred_fallthru
          _
        // Predicated region
        $region21: #{tpu_custom_call.1} parent=11 // pred_check
          %p284 = pneg %p111
        $region22: #{tpu_custom_call.1} parent=11 // pred_check_branch
          %286 = sbr.rel (%p284) target = $region24
        $region23: #{tpu_custom_call.1} parent=11 // pred_region
          _
        $region24: #{tpu_custom_call.1} parent=11 // pred_fallthru
          _
        // Predicated region
        $region25: #{tpu_custom_call.1} parent=11 // pred_check
          %p287 = pneg %p132
        $region26: #{tpu_custom_call.1} parent=11 // pred_check_branch
          %289 = sbr.rel (%p287) target = $region28
        $region27: #{tpu_custom_call.1} parent=11 // pred_region
          _
        $region28: #{tpu_custom_call.1} parent=11 // pred_fallthru
          _
        // Predicated region
        $region29: #{tpu_custom_call.1} parent=11 // pred_check
          %p290 = pneg %p153
        $region30: #{tpu_custom_call.1} parent=11 // pred_check_branch
          %292 = sbr.rel (%p290) target = $region32
        $region31: #{tpu_custom_call.1} parent=11 // pred_region
          _
        $region32: #{tpu_custom_call.1} parent=11 // pred_fallthru
          _
        // Predicated region
        $region33: #{tpu_custom_call.1} parent=11 // pred_check
          %p293 = pneg %p174
        $region34: #{tpu_custom_call.1} parent=11 // pred_check_branch
          %295 = sbr.rel (%p293) target = $region36
        $region35: #{tpu_custom_call.1} parent=11 // pred_region
          _
        $region36: #{tpu_custom_call.1} parent=11 // pred_fallthru
          _
        // Predicated region
        $region37: #{tpu_custom_call.1} parent=11 // pred_check
          %p296 = pneg %p195
        $region38: #{tpu_custom_call.1} parent=11 // pred_check_branch
          %298 = sbr.rel (%p296) target = $region40
        $region39: #{tpu_custom_call.1} parent=11 // pred_region
          _
        $region40: #{tpu_custom_call.1} parent=11 // pred_fallthru
          _
        // Predicated region
        $region41: #{tpu_custom_call.1} parent=11 // pred_check
          %p299 = pneg %p216
        $region42: #{tpu_custom_call.1} parent=11 // pred_check_branch
          %301 = sbr.rel (%p299) target = $region44
        $region43: #{tpu_custom_call.1} parent=11 // pred_region
          _
        $region44: #{tpu_custom_call.1} parent=11 // pred_fallthru
          _
        // Predicated region
        $region45: #{tpu_custom_call.1} parent=11 // pred_check
          %p302 = pneg %p237
        $region46: #{tpu_custom_call.1} parent=11 // pred_check_branch
          %304 = sbr.rel (%p302) target = $region48
        $region47: #{tpu_custom_call.1} parent=11 // pred_region
          _
        $region48: #{tpu_custom_call.1} parent=11 // pred_fallthru
          _
      $region12: #{tpu_custom_call.1} parent=5 // pred_fallthru
        _
      %p305 = scmp.lt.s32.totalorder %s22, 2
      // Predicated region
      $region49: #{tpu_custom_call.1} parent=5 // pred_check
        %p306 = pneg %p305
      $region50: #{tpu_custom_call.1} parent=5 // pred_check_branch
        %308 = sbr.rel (%p306) target = $region52
      $region51: #{tpu_custom_call.1} parent=5 // pred_region
        // Predicated region
        $region53: #{tpu_custom_call.1} parent=51 // pred_check
          %p309 = pneg %p42
        $region54: #{tpu_custom_call.1} parent=51 // pred_check_branch
          %311 = sbr.rel (%p309) target = $region56
        $region55: #{tpu_custom_call.1} parent=51 // pred_region
          %s312 = sand.u32 %s32, 1
          %s313 = scalar_lea.sflag [#allocation4], %s312
          %s314 = sand.u32 %s32, 1
          %s315 = smul.addr %s314, 16
          %s316 = scalar_lea.vmem [#allocation3], %s315
          %s318 = ssub.s32 256, 256
          %319 = vsyncadd %s313, %s318
          %s320 = smul.addr %s22, 2
          %s321 = smul.addr %s320, 128
          %s322 = scalar_lea.hbm %s0, %s321
          %s324 = sshll.u32 %s316, 4
          %s325 = int_to_ptr.vmem [resolvable:$true] %s324
          %327 = dma.hbm_to_vmem [thread:$0]  %s322, 256, %s325, %s313
        $region56: #{tpu_custom_call.1} parent=51 // pred_fallthru
          _
      $region52: #{tpu_custom_call.1} parent=5 // pred_fallthru
        _
      %p328 = scmp.le.s32.totalorder 1, %s22
      %p329 = scmp.lt.s32.totalorder %s22, 3
      %p330 = pnand %p328, %p329
      %p331 = pneg %p330
      // Predicated region
      $region57: #{tpu_custom_call.1} parent=5 // pred_check
        _
      $region58: #{tpu_custom_call.1} parent=5 // pred_check_branch
        %333 = sbr.rel (%p330) target = $region60
      $region59: #{tpu_custom_call.1} parent=5 // pred_region
        %s334 = ssub.s32 %s22, 1
        %s335 = sand.u32 %s35, 1
        %s336 = scalar_lea.sflag [#allocation4], %s335
        %s337 = sand.u32 %s35, 1
        %s338 = smul.addr %s337, 16
        %s339 = scalar_lea.vmem [#allocation3], %s338
        // Predicated region
        $region61: #{tpu_custom_call.1} parent=59 // pred_check
          %p340 = pneg %p48
        $region62: #{tpu_custom_call.1} parent=59 // pred_check_branch
          %342 = sbr.rel (%p340) target = $region64
        $region63: #{tpu_custom_call.1} parent=59 // pred_region
          %343 = dma.done %s336, 256
        $region64: #{tpu_custom_call.1} parent=59 // pred_fallthru
          _
        %s344 = sand.u32 %s35, 1
        %s345 = scalar_lea.sflag [#allocation4], %s344
        %s346 = sand.u32 %s35, 1
        %s347 = smul.addr %s346, 16
        %s348 = scalar_lea.vmem [#allocation3], %s347
        %p349 = pneg %p48
        %p350 = pneg %p45
        %p351 = pneg %p69
        %p352 = pneg %p66
        %p353 = pneg %p90
        %p354 = pneg %p87
        %p355 = pneg %p111
        %p356 = pneg %p108
        %p357 = pneg %p132
        %p358 = pneg %p129
        %p359 = pneg %p153
        %p360 = pneg %p150
        %p361 = pneg %p174
        %p362 = pneg %p171
        %p363 = pneg %p195
        %p364 = pneg %p192
        %p365 = pneg %p216
        %p366 = pneg %p213
        %p367 = pneg %p237
        %p368 = pneg %p234
        %p369 = pneg %p263
        %p370 = pneg %p260
        %s371 = sand.u32 %s250, 1
        %s372 = scalar_lea.sflag [#allocation5], %s371
        %s373 = sand.u32 %s250, 1
        %s374 = smul.addr %s373, 16
        %s375 = scalar_lea.vmem [#allocation6], %s374
        %v376 = vld [vmem:[%s339] sm:$0xff]
        %v377 = vld [vmem:[%s339 + $0x8] sm:$0xff]
        %378 = vxpose.xlu0.b32.start [1/16] %v376, 128
        %379 = vxpose.xlu0.b32.cont [2/16] 0.0, 128
        %380 = vxpose.xlu0.b32.cont [3/16] 0.0, 128
        %381 = vxpose.xlu0.b32.cont [4/16] 0.0, 128
        %382 = vxpose.xlu0.b32.cont [5/16] 0.0, 128
        %383 = vxpose.xlu0.b32.cont [6/16] 0.0, 128
        %384 = vxpose.xlu0.b32.cont [7/16] 0.0, 128
        %385 = vxpose.xlu0.b32.cont [8/16] 0.0, 128
        %386 = vxpose.xlu0.b32.cont [9/16] 0.0, 128
        %387 = vxpose.xlu0.b32.cont [10/16] 0.0, 128
        %388 = vxpose.xlu0.b32.cont [11/16] 0.0, 128
        %389 = vxpose.xlu0.b32.cont [12/16] 0.0, 128
        %390 = vxpose.xlu0.b32.cont [13/16] 0.0, 128
        %391 = vxpose.xlu0.b32.cont [14/16] 0.0, 128
        %392 = vxpose.xlu0.b32.cont [15/16] 0.0, 128
        %393 = vxpose.xlu0.b32.end [16/16] 0.0, 128
        %v394 = vpop.trf.xlu0
        %v395 = vpop.trf.xlu0
        %v396 = vpop.trf.xlu0
        %v397 = vpop.trf.xlu0
        %v398 = vpop.trf.xlu0
        %v399 = vpop.trf.xlu0
        %v400 = vpop.trf.xlu0
        %v401 = vpop.trf.xlu0
        %v402 = vpop.trf.xlu0
        %v403 = vpop.trf.xlu0
        %v404 = vpop.trf.xlu0
        %v405 = vpop.trf.xlu0
        %v406 = vpop.trf.xlu0
        %v407 = vpop.trf.xlu0
        %v408 = vpop.trf.xlu0
        %v409 = vpop.trf.xlu0
        %410 = vxpose.xlu0.b32.start [1/16] %v377, 128
        %411 = vxpose.xlu0.b32.cont [2/16] 0.0, 128
        %412 = vxpose.xlu0.b32.cont [3/16] 0.0, 128
        %413 = vxpose.xlu0.b32.cont [4/16] 0.0, 128
        %414 = vxpose.xlu0.b32.cont [5/16] 0.0, 128
        %415 = vxpose.xlu0.b32.cont [6/16] 0.0, 128
        %416 = vxpose.xlu0.b32.cont [7/16] 0.0, 128
        %417 = vxpose.xlu0.b32.cont [8/16] 0.0, 128
        %418 = vxpose.xlu0.b32.cont [9/16] 0.0, 128
        %419 = vxpose.xlu0.b32.cont [10/16] 0.0, 128
        %420 = vxpose.xlu0.b32.cont [11/16] 0.0, 128
        %421 = vxpose.xlu0.b32.cont [12/16] 0.0, 128
        %422 = vxpose.xlu0.b32.cont [13/16] 0.0, 128
        %423 = vxpose.xlu0.b32.cont [14/16] 0.0, 128
        %424 = vxpose.xlu0.b32.cont [15/16] 0.0, 128
        %425 = vxpose.xlu0.b32.end [16/16] 0.0, 128
        %v426 = vpop.trf.xlu0
        %v427 = vpop.trf.xlu0
        %v428 = vpop.trf.xlu0
        %v429 = vpop.trf.xlu0
        %v430 = vpop.trf.xlu0
        %v431 = vpop.trf.xlu0
        %v432 = vpop.trf.xlu0
        %v433 = vpop.trf.xlu0
        %v434 = vpop.trf.xlu0
        %v435 = vpop.trf.xlu0
        %v436 = vpop.trf.xlu0
        %v437 = vpop.trf.xlu0
        %v438 = vpop.trf.xlu0
        %v439 = vpop.trf.xlu0
        %v440 = vpop.trf.xlu0
        %v441 = vpop.trf.xlu0
        %v442 = vld [vmem:[%s1] sm:$0xff]
        %vm443 = vcmask 64512
        %v445 = vsel %vm443, %v394, 0
        %v448 = vsel %vm443, %v395, 0
        %v451 = vsel %vm443, %v396, 0
        %v454 = vsel %vm443, %v397, 0
        %v457 = vsel %vm443, %v398, 0
        %v460 = vsel %vm443, %v399, 0
        %v463 = vsel %vm443, %v400, 0
        %v466 = vsel %vm443, %v401, 0
        %v469 = vsel %vm443, %v402, 0
        %v472 = vsel %vm443, %v403, 0
        %v475 = vsel %vm443, %v404, 0
        %v478 = vsel %vm443, %v405, 0
        %v481 = vsel %vm443, %v406, 0
        %v484 = vsel %vm443, %v407, 0
        %v487 = vsel %vm443, %v408, 0
        %v490 = vsel %vm443, %v409, 0
        %v493 = vsel %vm443, %v426, 0
        %v496 = vsel %vm443, %v427, 0
        %v499 = vsel %vm443, %v428, 0
        %v502 = vsel %vm443, %v429, 0
        %v505 = vsel %vm443, %v430, 0
        %v508 = vsel %vm443, %v431, 0
        %v511 = vsel %vm443, %v432, 0
        %v514 = vsel %vm443, %v433, 0
        %v517 = vsel %vm443, %v434, 0
        %v520 = vsel %vm443, %v435, 0
        %v523 = vsel %vm443, %v436, 0
        %v526 = vsel %vm443, %v437, 0
        %v529 = vsel %vm443, %v438, 0
        %v532 = vsel %vm443, %v439, 0
        %v535 = vsel %vm443, %v440, 0
        %v538 = vsel %vm443, %v441, 0
        %540 = vmatprep.subr.mxu0 0.0
        %541 = vmatpush1.msra.mxu0 %v442
        %542 = vmatprep.subr.mxu0 0.0
        %543 = vmatpush1.msra.mxu0 0.0
        %544 = vmatprep.subr.mxu0 0.0
        %545 = vmatpush1.msra.mxu0 0.0
        %546 = vmatprep.subr.mxu0 0.0
        %547 = vmatpush1.msra.mxu0 0.0
        %548 = vmatprep.subr.mxu0 0.0
        %549 = vmatpush1.msra.mxu0 0.0
        %550 = vmatprep.subr.mxu0 0.0
        %551 = vmatpush1.msra.mxu0 0.0
        %552 = vmatprep.subr.mxu0 0.0
        %553 = vmatpush1.msra.mxu0 0.0
        %554 = vmatprep.subr.mxu0 0.0
        %555 = vmatpush1.msra.mxu0 0.0
        %556 = vmatprep.subr.mxu0 0.0
        %557 = vmatpush1.msra.mxu0 0.0
        %558 = vmatprep.subr.mxu0 0.0
        %559 = vmatpush1.msra.mxu0 0.0
        %560 = vmatprep.subr.mxu0 0.0
        %561 = vmatpush1.msra.mxu0 0.0
        %562 = vmatprep.subr.mxu0 0.0
        %563 = vmatpush1.msra.mxu0 0.0
        %564 = vmatprep.subr.mxu0 0.0
        %565 = vmatpush1.msra.mxu0 0.0
        %566 = vmatprep.subr.mxu0 0.0
        %567 = vmatpush1.msra.mxu0 0.0
        %568 = vmatprep.subr.mxu0 0.0
        %569 = vmatpush1.msra.mxu0 0.0
        %570 = vmatprep.subr.mxu0 0.0
        %571 = vmatpush1.msra.mxu0 0.0
        %572 = vmatprep.subr.mxu0 0.0
        %573 = vmatpush1.msra.mxu0 0.0
        %574 = vmatprep.subr.mxu0 0.0
        %575 = vmatpush1.msra.mxu0 0.0
        %576 = vmatprep.subr.mxu0 0.0
        %577 = vmatpush1.msra.mxu0 0.0
        %578 = vmatprep.subr.mxu0 0.0
        %579 = vmatpush1.msra.mxu0 0.0
        %580 = vmatprep.subr.mxu0 0.0
        %581 = vmatpush1.msra.mxu0 0.0
        %582 = vmatprep.subr.mxu0 0.0
        %583 = vmatpush1.msra.mxu0 0.0
        %584 = vmatprep.subr.mxu0 0.0
        %585 = vmatpush1.msra.mxu0 0.0
        %586 = vmatprep.subr.mxu0 0.0
        %587 = vmatpush1.msra.mxu0 0.0
        %588 = vmatprep.subr.mxu0 0.0
        %589 = vmatpush1.msra.mxu0 0.0
        %590 = vmatprep.subr.mxu0 0.0
        %591 = vmatpush1.msra.mxu0 0.0
        %592 = vmatprep.subr.mxu0 0.0
        %593 = vmatpush1.msra.mxu0 0.0
        %594 = vmatprep.subr.mxu0 0.0
        %595 = vmatpush1.msra.mxu0 0.0
        %596 = vmatprep.subr.mxu0 0.0
        %597 = vmatpush1.msra.mxu0 0.0
        %598 = vmatprep.subr.mxu0 0.0
        %599 = vmatpush1.msra.mxu0 0.0
        %600 = vmatprep.subr.mxu0 0.0
        %601 = vmatpush1.msra.mxu0 0.0
        %602 = vmatprep.subr.mxu0 0.0
        %603 = vmatpush1.msra.mxu0 0.0
        %604 = vmatprep.mubr.f32.mxu0 0.0
        %605 = vmatmul.mubr.f32.gmra.mrb[0].mxu0 %v445
        %v606 = vpop.f32.mrb[0].mxu0
        %v607 = vadd.f32 0.0, %v606
        %v608 = vpop.f32.mrb[0].mxu0
        %609 = vmatprep.mubr.f32.mxu0 0.0
        %610 = vmatmul.mubr.f32.gmra.mrb[0].mxu0 %v448
        %v611 = vpop.f32.mrb[0].mxu0
        %v612 = vadd.f32 0.0, %v611
        %v613 = vpop.f32.mrb[0].mxu0
        %614 = vmatprep.mubr.f32.mxu0 0.0
        %615 = vmatmul.mubr.f32.gmra.mrb[0].mxu0 %v451
        %v616 = vpop.f32.mrb[0].mxu0
        %v617 = vadd.f32 0.0, %v616
        %v618 = vpop.f32.mrb[0].mxu0
        %619 = vmatprep.mubr.f32.mxu0 0.0
        %620 = vmatmul.mubr.f32.gmra.mrb[0].mxu0 %v454
        %v621 = vpop.f32.mrb[0].mxu0
        %v622 = vadd.f32 0.0, %v621
        %v623 = vpop.f32.mrb[0].mxu0
        %624 = vmatprep.mubr.f32.mxu0 0.0
        %625 = vmatmul.mubr.f32.gmra.mrb[0].mxu0 %v457
        %v626 = vpop.f32.mrb[0].mxu0
        %v627 = vadd.f32 0.0, %v626
        %v628 = vpop.f32.mrb[0].mxu0
        %629 = vmatprep.mubr.f32.mxu0 0.0
        %630 = vmatmul.mubr.f32.gmra.mrb[0].mxu0 %v460
        %v631 = vpop.f32.mrb[0].mxu0
        %v632 = vadd.f32 0.0, %v631
        %v633 = vpop.f32.mrb[0].mxu0
        %634 = vmatprep.mubr.f32.mxu0 0.0
        %635 = vmatmul.mubr.f32.gmra.mrb[0].mxu0 %v463
        %v636 = vpop.f32.mrb[0].mxu0
        %v637 = vadd.f32 0.0, %v636
        %v638 = vpop.f32.mrb[0].mxu0
        %639 = vmatprep.mubr.f32.mxu0 0.0
        %640 = vmatmul.mubr.f32.gmra.mrb[0].mxu0 %v466
        %v641 = vpop.f32.mrb[0].mxu0
        %v642 = vadd.f32 0.0, %v641
        %v643 = vpop.f32.mrb[0].mxu0
        %644 = vmatprep.mubr.f32.mxu0 0.0
        %645 = vmatmul.mubr.f32.gmra.mrb[0].mxu0 %v469
        %v646 = vpop.f32.mrb[0].mxu0
        %v647 = vadd.f32 0.0, %v646
        %v648 = vpop.f32.mrb[0].mxu0
        %649 = vmatprep.mubr.f32.mxu0 0.0
        %650 = vmatmul.mubr.f32.gmra.mrb[0].mxu0 %v472
        %v651 = vpop.f32.mrb[0].mxu0
        %v652 = vadd.f32 0.0, %v651
        %v653 = vpop.f32.mrb[0].mxu0
        %654 = vmatprep.mubr.f32.mxu0 0.0
        %655 = vmatmul.mubr.f32.gmra.mrb[0].mxu0 %v475
        %v656 = vpop.f32.mrb[0].mxu0
        %v657 = vadd.f32 0.0, %v656
        %v658 = vpop.f32.mrb[0].mxu0
        %659 = vmatprep.mubr.f32.mxu0 0.0
        %660 = vmatmul.mubr.f32.gmra.mrb[0].mxu0 %v478
        %v661 = vpop.f32.mrb[0].mxu0
        %v662 = vadd.f32 0.0, %v661
        %v663 = vpop.f32.mrb[0].mxu0
        %664 = vmatprep.mubr.f32.mxu0 0.0
        %665 = vmatmul.mubr.f32.gmra.mrb[0].mxu0 %v481
        %v666 = vpop.f32.mrb[0].mxu0
        %v667 = vadd.f32 0.0, %v666
        %v668 = vpop.f32.mrb[0].mxu0
        %669 = vmatprep.mubr.f32.mxu0 0.0
        %670 = vmatmul.mubr.f32.gmra.mrb[0].mxu0 %v484
        %v671 = vpop.f32.mrb[0].mxu0
        %v672 = vadd.f32 0.0, %v671
        %v673 = vpop.f32.mrb[0].mxu0
        %674 = vmatprep.mubr.f32.mxu0 0.0
        %675 = vmatmul.mubr.f32.gmra.mrb[0].mxu0 %v487
        %v676 = vpop.f32.mrb[0].mxu0
        %v677 = vadd.f32 0.0, %v676
        %v678 = vpop.f32.mrb[0].mxu0
        %679 = vmatprep.mubr.f32.mxu0 0.0
        %680 = vmatmul.mubr.f32.gmra.mrb[0].mxu0 %v490
        %v681 = vpop.f32.mrb[0].mxu0
        %v682 = vadd.f32 0.0, %v681
        %v683 = vpop.f32.mrb[0].mxu0
        %684 = vmatprep.mubr.f32.mxu0 0.0
        %685 = vmatmul.mubr.f32.gmra.mrb[0].mxu0 %v493
        %v686 = vpop.f32.mrb[0].mxu0
        %v687 = vadd.f32 0.0, %v686
        %v688 = vpop.f32.mrb[0].mxu0
        %689 = vmatprep.mubr.f32.mxu0 0.0
        %690 = vmatmul.mubr.f32.gmra.mrb[0].mxu0 %v496
        %v691 = vpop.f32.mrb[0].mxu0
        %v692 = vadd.f32 0.0, %v691
        %v693 = vpop.f32.mrb[0].mxu0
        %694 = vmatprep.mubr.f32.mxu0 0.0
        %695 = vmatmul.mubr.f32.gmra.mrb[0].mxu0 %v499
        %v696 = vpop.f32.mrb[0].mxu0
        %v697 = vadd.f32 0.0, %v696
        %v698 = vpop.f32.mrb[0].mxu0
        %699 = vmatprep.mubr.f32.mxu0 0.0
        %700 = vmatmul.mubr.f32.gmra.mrb[0].mxu0 %v502
        %v701 = vpop.f32.mrb[0].mxu0
        %v702 = vadd.f32 0.0, %v701
        %v703 = vpop.f32.mrb[0].mxu0
        %704 = vmatprep.mubr.f32.mxu0 0.0
        %705 = vmatmul.mubr.f32.gmra.mrb[0].mxu0 %v505
        %v706 = vpop.f32.mrb[0].mxu0
        %v707 = vadd.f32 0.0, %v706
        %v708 = vpop.f32.mrb[0].mxu0
        %709 = vmatprep.mubr.f32.mxu0 0.0
        %710 = vmatmul.mubr.f32.gmra.mrb[0].mxu0 %v508
        %v711 = vpop.f32.mrb[0].mxu0
        %v712 = vadd.f32 0.0, %v711
        %v713 = vpop.f32.mrb[0].mxu0
        %714 = vmatprep.mubr.f32.mxu0 0.0
        %715 = vmatmul.mubr.f32.gmra.mrb[0].mxu0 %v511
        %v716 = vpop.f32.mrb[0].mxu0
        %v717 = vadd.f32 0.0, %v716
        %v718 = vpop.f32.mrb[0].mxu0
        %719 = vmatprep.mubr.f32.mxu0 0.0
        %720 = vmatmul.mubr.f32.gmra.mrb[0].mxu0 %v514
        %v721 = vpop.f32.mrb[0].mxu0
        %v722 = vadd.f32 0.0, %v721
        %v723 = vpop.f32.mrb[0].mxu0
        %724 = vmatprep.mubr.f32.mxu0 0.0
        %725 = vmatmul.mubr.f32.gmra.mrb[0].mxu0 %v517
        %v726 = vpop.f32.mrb[0].mxu0
        %v727 = vadd.f32 0.0, %v726
        %v728 = vpop.f32.mrb[0].mxu0
        %729 = vmatprep.mubr.f32.mxu0 0.0
        %730 = vmatmul.mubr.f32.gmra.mrb[0].mxu0 %v520
        %v731 = vpop.f32.mrb[0].mxu0
        %v732 = vadd.f32 0.0, %v731
        %v733 = vpop.f32.mrb[0].mxu0
        %734 = vmatprep.mubr.f32.mxu0 0.0
        %735 = vmatmul.mubr.f32.gmra.mrb[0].mxu0 %v523
        %v736 = vpop.f32.mrb[0].mxu0
        %v737 = vadd.f32 0.0, %v736
        %v738 = vpop.f32.mrb[0].mxu0
        %739 = vmatprep.mubr.f32.mxu0 0.0
        %740 = vmatmul.mubr.f32.gmra.mrb[0].mxu0 %v526
        %v741 = vpop.f32.mrb[0].mxu0
        %v742 = vadd.f32 0.0, %v741
        %v743 = vpop.f32.mrb[0].mxu0
        %744 = vmatprep.mubr.f32.mxu0 0.0
        %745 = vmatmul.mubr.f32.gmra.mrb[0].mxu0 %v529
        %v746 = vpop.f32.mrb[0].mxu0
        %v747 = vadd.f32 0.0, %v746
        %v748 = vpop.f32.mrb[0].mxu0
        %749 = vmatprep.mubr.f32.mxu0 0.0
        %750 = vmatmul.mubr.f32.gmra.mrb[0].mxu0 %v532
        %v751 = vpop.f32.mrb[0].mxu0
        %v752 = vadd.f32 0.0, %v751
        %v753 = vpop.f32.mrb[0].mxu0
        %754 = vmatprep.mubr.f32.mxu0 0.0
        %755 = vmatmul.mubr.f32.gmra.mrb[0].mxu0 %v535
        %v756 = vpop.f32.mrb[0].mxu0
        %v757 = vadd.f32 0.0, %v756
        %v758 = vpop.f32.mrb[0].mxu0
        %759 = vmatprep.mubr.f32.mxu0 0.0
        %760 = vmatmul.mubr.f32.gmra.mrb[0].mxu0 %v538
        %v761 = vpop.f32.mrb[0].mxu0
        %v762 = vadd.f32 0.0, %v761
        %v763 = vpop.f32.mrb[0].mxu0
        %764 = vdwg.mxu0
        %v765 = vld [vmem:[%s2] sm:$0x1]
        %v767 = vlaneseq
        %v768 = vshrl.u32 %v767, 7
        %v769 = vsub.s32 0, %v768
        %v770 = vrot.slane %v765, %v769
        %v772 = vmul.f32 %v607, %v770
        %v773 = vmul.f32 %v612, %v770
        %v774 = vmul.f32 %v617, %v770
        %v775 = vmul.f32 %v622, %v770
        %v776 = vmul.f32 %v627, %v770
        %v777 = vmul.f32 %v632, %v770
        %v778 = vmul.f32 %v637, %v770
        %v779 = vmul.f32 %v642, %v770
        %v780 = vmul.f32 %v647, %v770
        %v781 = vmul.f32 %v652, %v770
        %v782 = vmul.f32 %v657, %v770
        %v783 = vmul.f32 %v662, %v770
        %v784 = vmul.f32 %v667, %v770
        %v785 = vmul.f32 %v672, %v770
        %v786 = vmul.f32 %v677, %v770
        %v787 = vmul.f32 %v682, %v770
        %v788 = vmul.f32 %v687, %v770
        %v789 = vmul.f32 %v692, %v770
        %v790 = vmul.f32 %v697, %v770
        %v791 = vmul.f32 %v702, %v770
        %v792 = vmul.f32 %v707, %v770
        %v793 = vmul.f32 %v712, %v770
        %v794 = vmul.f32 %v717, %v770
        %v795 = vmul.f32 %v722, %v770
        %v796 = vmul.f32 %v727, %v770
        %v797 = vmul.f32 %v732, %v770
        %v798 = vmul.f32 %v737, %v770
        %v799 = vmul.f32 %v742, %v770
        %v800 = vmul.f32 %v747, %v770
        %v801 = vmul.f32 %v752, %v770
        %v802 = vmul.f32 %v757, %v770
        %v803 = vmul.f32 %v762, %v770
        %v804 = vld [vmem:[%s3] sm:$0x1]
        %v806 = vlaneseq
        %v807 = vshrl.u32 %v806, 7
        %v808 = vsub.s32 0, %v807
        %v809 = vrot.slane %v804, %v808
        %v811 = vadd.f32 %v772, %v809
        %v812 = vadd.f32 %v773, %v809
        %v813 = vadd.f32 %v774, %v809
        %v814 = vadd.f32 %v775, %v809
        %v815 = vadd.f32 %v776, %v809
        %v816 = vadd.f32 %v777, %v809
        %v817 = vadd.f32 %v778, %v809
        %v818 = vadd.f32 %v779, %v809
        %v819 = vadd.f32 %v780, %v809
        %v820 = vadd.f32 %v781, %v809
        %v821 = vadd.f32 %v782, %v809
        %v822 = vadd.f32 %v783, %v809
        %v823 = vadd.f32 %v784, %v809
        %v824 = vadd.f32 %v785, %v809
        %v825 = vadd.f32 %v786, %v809
        %v826 = vadd.f32 %v787, %v809
        %v827 = vadd.f32 %v788, %v809
        %v828 = vadd.f32 %v789, %v809
        %v829 = vadd.f32 %v790, %v809
        %v830 = vadd.f32 %v791, %v809
        %v831 = vadd.f32 %v792, %v809
        %v832 = vadd.f32 %v793, %v809
        %v833 = vadd.f32 %v794, %v809
        %v834 = vadd.f32 %v795, %v809
        %v835 = vadd.f32 %v796, %v809
        %v836 = vadd.f32 %v797, %v809
        %v837 = vadd.f32 %v798, %v809
        %v838 = vadd.f32 %v799, %v809
        %v839 = vadd.f32 %v800, %v809
        %v840 = vadd.f32 %v801, %v809
        %v841 = vadd.f32 %v802, %v809
        %v842 = vadd.f32 %v803, %v809
        %vm843 = vcmp.ge.f32.partialorder %v811, 0.0
        %vm844 = vcmp.ge.f32.partialorder %v812, 0.0
        %vm845 = vcmp.ge.f32.partialorder %v813, 0.0
        %vm846 = vcmp.ge.f32.partialorder %v814, 0.0
        %vm847 = vcmp.ge.f32.partialorder %v815, 0.0
        %vm848 = vcmp.ge.f32.partialorder %v816, 0.0
        %vm849 = vcmp.ge.f32.partialorder %v817, 0.0
        %vm850 = vcmp.ge.f32.partialorder %v818, 0.0
        %vm851 = vcmp.ge.f32.partialorder %v819, 0.0
        %vm852 = vcmp.ge.f32.partialorder %v820, 0.0
        %vm853 = vcmp.ge.f32.partialorder %v821, 0.0
        %vm854 = vcmp.ge.f32.partialorder %v822, 0.0
        %vm855 = vcmp.ge.f32.partialorder %v823, 0.0
        %vm856 = vcmp.ge.f32.partialorder %v824, 0.0
        %vm857 = vcmp.ge.f32.partialorder %v825, 0.0
        %vm858 = vcmp.ge.f32.partialorder %v826, 0.0
        %vm859 = vcmp.ge.f32.partialorder %v827, 0.0
        %vm860 = vcmp.ge.f32.partialorder %v828, 0.0
        %vm861 = vcmp.ge.f32.partialorder %v829, 0.0
        %vm862 = vcmp.ge.f32.partialorder %v830, 0.0
        %vm863 = vcmp.ge.f32.partialorder %v831, 0.0
        %vm864 = vcmp.ge.f32.partialorder %v832, 0.0
        %vm865 = vcmp.ge.f32.partialorder %v833, 0.0
        %vm866 = vcmp.ge.f32.partialorder %v834, 0.0
        %vm867 = vcmp.ge.f32.partialorder %v835, 0.0
        %vm868 = vcmp.ge.f32.partialorder %v836, 0.0
        %vm869 = vcmp.ge.f32.partialorder %v837, 0.0
        %vm870 = vcmp.ge.f32.partialorder %v838, 0.0
        %vm871 = vcmp.ge.f32.partialorder %v839, 0.0
        %vm872 = vcmp.ge.f32.partialorder %v840, 0.0
        %vm873 = vcmp.ge.f32.partialorder %v841, 0.0
        %vm874 = vcmp.ge.f32.partialorder %v842, 0.0
        %v875 = vmul.f32 %v811, 0.01
        %v876 = vmul.f32 %v812, 0.01
        %v877 = vmul.f32 %v813, 0.01
        %v878 = vmul.f32 %v814, 0.01
        %v879 = vmul.f32 %v815, 0.01
        %v880 = vmul.f32 %v816, 0.01
        %v881 = vmul.f32 %v817, 0.01
        %v882 = vmul.f32 %v818, 0.01
        %v883 = vmul.f32 %v819, 0.01
        %v884 = vmul.f32 %v820, 0.01
        %v885 = vmul.f32 %v821, 0.01
        %v886 = vmul.f32 %v822, 0.01
        %v887 = vmul.f32 %v823, 0.01
        %v888 = vmul.f32 %v824, 0.01
        %v889 = vmul.f32 %v825, 0.01
        %v890 = vmul.f32 %v826, 0.01
        %v891 = vmul.f32 %v827, 0.01
        %v892 = vmul.f32 %v828, 0.01
        %v893 = vmul.f32 %v829, 0.01
        %v894 = vmul.f32 %v830, 0.01
        %v895 = vmul.f32 %v831, 0.01
        %v896 = vmul.f32 %v832, 0.01
        %v897 = vmul.f32 %v833, 0.01
        %v898 = vmul.f32 %v834, 0.01
        %v899 = vmul.f32 %v835, 0.01
        %v900 = vmul.f32 %v836, 0.01
        %v901 = vmul.f32 %v837, 0.01
        %v902 = vmul.f32 %v838, 0.01
        %v903 = vmul.f32 %v839, 0.01
        %v904 = vmul.f32 %v840, 0.01
        %v905 = vmul.f32 %v841, 0.01
        %v906 = vmul.f32 %v842, 0.01
        %v907 = vsel %vm843, %v811, %v875
        %v908 = vsel %vm844, %v812, %v876
        %v909 = vsel %vm845, %v813, %v877
        %v910 = vsel %vm846, %v814, %v878
        %v911 = vsel %vm847, %v815, %v879
        %v912 = vsel %vm848, %v816, %v880
        %v913 = vsel %vm849, %v817, %v881
        %v914 = vsel %vm850, %v818, %v882
        %v915 = vsel %vm851, %v819, %v883
        %v916 = vsel %vm852, %v820, %v884
        %v917 = vsel %vm853, %v821, %v885
        %v918 = vsel %vm854, %v822, %v886
        %v919 = vsel %vm855, %v823, %v887
        %v920 = vsel %vm856, %v824, %v888
        %v921 = vsel %vm857, %v825, %v889
        %v922 = vsel %vm858, %v826, %v890
        %v923 = vsel %vm859, %v827, %v891
        %v924 = vsel %vm860, %v828, %v892
        %v925 = vsel %vm861, %v829, %v893
        %v926 = vsel %vm862, %v830, %v894
        %v927 = vsel %vm863, %v831, %v895
        %v928 = vsel %vm864, %v832, %v896
        %v929 = vsel %vm865, %v833, %v897
        %v930 = vsel %vm866, %v834, %v898
        %v931 = vsel %vm867, %v835, %v899
        %v932 = vsel %vm868, %v836, %v900
        %v933 = vsel %vm869, %v837, %v901
        %v934 = vsel %vm870, %v838, %v902
        %v935 = vsel %vm871, %v839, %v903
        %v936 = vsel %vm872, %v840, %v904
        %v937 = vsel %vm873, %v841, %v905
        %v938 = vsel %vm874, %v842, %v906
        %vm939 = vcmask 31744
        %940 = vst.msk [vmem:[#allocation2] sm:$0xff] %vm939, 0.0
        %941 = vst.msk [vmem:[#allocation2 + $0x8] sm:$0xff] %vm939, 0.0
        %vm942 = vcmask 25600
        %943 = vst.msk [vmem:[#allocation2 + $0x10] sm:$0x3] %vm942, 0.0
        %944 = vst.msk [vmem:[#allocation2 + $0x18] sm:$0xff] %vm939, 0.0
        %945 = vst.msk [vmem:[#allocation2 + $0x20] sm:$0xff] %vm939, 0.0
        %946 = vst.msk [vmem:[#allocation2 + $0x28] sm:$0x3] %vm942, 0.0
        %947 = vst.msk [vmem:[#allocation2 + $0x30] sm:$0xff] %vm939, 0.0
        %948 = vst.msk [vmem:[#allocation2 + $0x38] sm:$0xff] %vm939, 0.0
        %949 = vst.msk [vmem:[#allocation2 + $0x40] sm:$0x3] %vm942, 0.0
        %950 = vst.msk [vmem:[#allocation2 + $0x48] sm:$0xff] %vm939, 0.0
        %951 = vst.msk [vmem:[#allocation2 + $0x50] sm:$0xff] %vm939, 0.0
        %952 = vst.msk [vmem:[#allocation2 + $0x58] sm:$0x3] %vm942, 0.0
        %953 = vst.msk [vmem:[#allocation2 + $0x60] sm:$0xff] %vm939, 0.0
        %954 = vst.msk [vmem:[#allocation2 + $0x68] sm:$0xff] %vm939, 0.0
        %955 = vst.msk [vmem:[#allocation2 + $0x70] sm:$0x3] %vm942, 0.0
        %956 = vst.msk [vmem:[#allocation2 + $0x78] sm:$0xff] %vm939, 0.0
        %957 = vst.msk [vmem:[#allocation2 + $0x80] sm:$0xff] %vm939, 0.0
        %958 = vst.msk [vmem:[#allocation2 + $0x88] sm:$0x3] %vm942, 0.0
        %959 = vst.msk [vmem:[#allocation2 + $0x90] sm:$0xff] %vm939, 0.0
        %960 = vst.msk [vmem:[#allocation2 + $0x98] sm:$0xff] %vm939, 0.0
        %961 = vst.msk [vmem:[#allocation2 + $0xa0] sm:$0x3] %vm942, 0.0
        %962 = vst.msk [vmem:[#allocation2 + $0xa8] sm:$0xff] %vm939, 0.0
        %963 = vst.msk [vmem:[#allocation2 + $0xb0] sm:$0xff] %vm939, 0.0
        %964 = vst.msk [vmem:[#allocation2 + $0xb8] sm:$0x3] %vm942, 0.0
        %965 = vst.msk [vmem:[#allocation2 + $0xc0] sm:$0xff] %vm939, 0.0
        %966 = vst.msk [vmem:[#allocation2 + $0xc8] sm:$0xff] %vm939, 0.0
        %967 = vst.msk [vmem:[#allocation2 + $0xd0] sm:$0x3] %vm942, 0.0
        %968 = vst.msk [vmem:[#allocation2 + $0xd8] sm:$0xff] %vm939, 0.0
        %969 = vst.msk [vmem:[#allocation2 + $0xe0] sm:$0xff] %vm939, 0.0
        %970 = vst.msk [vmem:[#allocation2 + $0xe8] sm:$0x3] %vm942, 0.0
        %971 = vst.msk [vmem:[#allocation2 + $0xf0] sm:$0xff] %vm939, 0.0
        %972 = vst.msk [vmem:[#allocation2 + $0xf8] sm:$0xff] %vm939, 0.0
        %973 = vst.msk [vmem:[#allocation2 + $0x100] sm:$0x3] %vm942, 0.0
        %974 = vst.msk [vmem:[#allocation2 + $0x108] sm:$0xff] %vm939, 0.0
        %975 = vst.msk [vmem:[#allocation2 + $0x110] sm:$0xff] %vm939, 0.0
        %976 = vst.msk [vmem:[#allocation2 + $0x118] sm:$0x3] %vm942, 0.0
        %977 = vst.msk [vmem:[#allocation2 + $0x120] sm:$0xff] %vm939, 0.0
        %978 = vst.msk [vmem:[#allocation2 + $0x128] sm:$0xff] %vm939, 0.0
        %979 = vst.msk [vmem:[#allocation2 + $0x130] sm:$0x3] %vm942, 0.0
        %980 = vst.msk [vmem:[#allocation2 + $0x138] sm:$0xff] %vm939, 0.0
        %981 = vst.msk [vmem:[#allocation2 + $0x140] sm:$0xff] %vm939, 0.0
        %982 = vst.msk [vmem:[#allocation2 + $0x148] sm:$0x3] %vm942, 0.0
        %983 = vst.msk [vmem:[#allocation2 + $0x150] sm:$0xff] %vm939, 0.0
        %984 = vst.msk [vmem:[#allocation2 + $0x158] sm:$0xff] %vm939, 0.0
        %985 = vst.msk [vmem:[#allocation2 + $0x160] sm:$0x3] %vm942, 0.0
        %986 = vst.msk [vmem:[#allocation2 + $0x168] sm:$0xff] %vm939, 0.0
        %987 = vst.msk [vmem:[#allocation2 + $0x170] sm:$0xff] %vm939, 0.0
        %988 = vst.msk [vmem:[#allocation2 + $0x178] sm:$0x3] %vm942, 0.0
        %989 = vst.msk [vmem:[#allocation2 + $0x180] sm:$0xff] %vm939, 0.0
        %990 = vst.msk [vmem:[#allocation2 + $0x188] sm:$0xff] %vm939, 0.0
        %991 = vst.msk [vmem:[#allocation2 + $0x190] sm:$0x3] %vm942, 0.0
        %992 = vst.msk [vmem:[#allocation2 + $0x198] sm:$0xff] %vm939, 0.0
        %993 = vst.msk [vmem:[#allocation2 + $0x1a0] sm:$0xff] %vm939, 0.0
        %994 = vst.msk [vmem:[#allocation2 + $0x1a8] sm:$0x3] %vm942, 0.0
        %s995 = scalar_lea.vmem [#allocation2], 24
        %996 = vst.msk [vmem:[%s995 + $0x1] sm:$0xff] %vm939, %v907
        %997 = vst.msk [vmem:[%s995 + $0x9] sm:$0xff] %vm939, %v908
        %998 = vst.msk [vmem:[%s995 + $0x19] sm:$0xff] %vm939, %v909
        %999 = vst.msk [vmem:[%s995 + $0x21] sm:$0xff] %vm939, %v910
        %1000 = vst.msk [vmem:[%s995 + $0x31] sm:$0xff] %vm939, %v911
        %1001 = vst.msk [vmem:[%s995 + $0x39] sm:$0xff] %vm939, %v912
        %1002 = vst.msk [vmem:[%s995 + $0x49] sm:$0xff] %vm939, %v913
        %1003 = vst.msk [vmem:[%s995 + $0x51] sm:$0xff] %vm939, %v914
        %1004 = vst.msk [vmem:[%s995 + $0x61] sm:$0xff] %vm939, %v915
        %1005 = vst.msk [vmem:[%s995 + $0x69] sm:$0xff] %vm939, %v916
        %1006 = vst.msk [vmem:[%s995 + $0x79] sm:$0xff] %vm939, %v917
        %1007 = vst.msk [vmem:[%s995 + $0x81] sm:$0xff] %vm939, %v918
        %1008 = vst.msk [vmem:[%s995 + $0x91] sm:$0xff] %vm939, %v919
        %1009 = vst.msk [vmem:[%s995 + $0x99] sm:$0xff] %vm939, %v920
        %1010 = vst.msk [vmem:[%s995 + $0xa9] sm:$0xff] %vm939, %v921
        %1011 = vst.msk [vmem:[%s995 + $0xb1] sm:$0xff] %vm939, %v922
        %1012 = vst.msk [vmem:[%s995 + $0xc1] sm:$0xff] %vm939, %v923
        %1013 = vst.msk [vmem:[%s995 + $0xc9] sm:$0xff] %vm939, %v924
        %1014 = vst.msk [vmem:[%s995 + $0xd9] sm:$0xff] %vm939, %v925
        %1015 = vst.msk [vmem:[%s995 + $0xe1] sm:$0xff] %vm939, %v926
        %1016 = vst.msk [vmem:[%s995 + $0xf1] sm:$0xff] %vm939, %v927
        %1017 = vst.msk [vmem:[%s995 + $0xf9] sm:$0xff] %vm939, %v928
        %1018 = vst.msk [vmem:[%s995 + $0x109] sm:$0xff] %vm939, %v929
        %1019 = vst.msk [vmem:[%s995 + $0x111] sm:$0xff] %vm939, %v930
        %1020 = vst.msk [vmem:[%s995 + $0x121] sm:$0xff] %vm939, %v931
        %1021 = vst.msk [vmem:[%s995 + $0x129] sm:$0xff] %vm939, %v932
        %1022 = vst.msk [vmem:[%s995 + $0x139] sm:$0xff] %vm939, %v933
        %1023 = vst.msk [vmem:[%s995 + $0x141] sm:$0xff] %vm939, %v934
        %1024 = vst.msk [vmem:[%s995 + $0x151] sm:$0xff] %vm939, %v935
        %1025 = vst.msk [vmem:[%s995 + $0x159] sm:$0xff] %vm939, %v936
        %1026 = vst.msk [vmem:[%s995 + $0x169] sm:$0xff] %vm939, %v937
        %1027 = vst.msk [vmem:[%s995 + $0x171] sm:$0xff] %vm939, %v938
        %v1028 = vld [vmem:[%s4] sm:$0xff]
        %v1029 = vld [vmem:[%s4 + $0x8] sm:$0x1]
        %v1030 = vld [vmem:[#allocation2] ss:$2 sm:$0xff]
        %s1031 = scalar_lea.vmem [#allocation2], 48
        %v1032 = vld [vmem:[%s1031] ss:$2 sm:$0xff]
        %s1033 = scalar_lea.vmem [#allocation2], 96
        %v1034 = vld [vmem:[%s1033] ss:$2 sm:$0xff]
        %s1035 = scalar_lea.vmem [#allocation2], 144
        %v1036 = vld [vmem:[%s1035] ss:$2 sm:$0xff]
        %s1037 = scalar_lea.vmem [#allocation2], 192
        %v1038 = vld [vmem:[%s1037] ss:$2 sm:$0xff]
        %s1039 = scalar_lea.vmem [#allocation2], 240
        %v1040 = vld [vmem:[%s1039] ss:$2 sm:$0xff]
        %s1041 = scalar_lea.vmem [#allocation2], 288
        %v1042 = vld [vmem:[%s1041] ss:$2 sm:$0xff]
        %s1043 = scalar_lea.vmem [#allocation2], 336
        %v1044 = vld [vmem:[%s1043] ss:$2 sm:$0xff]
        %v1045 = vlaneseq
        %v1046 = vshrl.u32 %v1045, 7
        %v1047 = vsub.s32 0, %v1046
        %v1048 = vrot.slane %v1028, %v1047
        %v1049 = vmul.f32 %v1030, %v1048
        %v1050 = vmul.f32 %v1032, %v1048
        %v1051 = vmul.f32 %v1034, %v1048
        %v1052 = vmul.f32 %v1036, %v1048
        %v1053 = vmul.f32 %v1038, %v1048
        %v1054 = vmul.f32 %v1040, %v1048
        %v1055 = vmul.f32 %v1042, %v1048
        %v1056 = vmul.f32 %v1044, %v1048
        %v1057 = vadd.f32 %v1049, 0.0
        %v1058 = vadd.f32 %v1050, 0.0
        %v1059 = vadd.f32 %v1051, 0.0
        %v1060 = vadd.f32 %v1052, 0.0
        %v1061 = vadd.f32 %v1053, 0.0
        %v1062 = vadd.f32 %v1054, 0.0
        %v1063 = vadd.f32 %v1055, 0.0
        %v1064 = vadd.f32 %v1056, 0.0
        %s1065 = scalar_lea.vmem [#allocation2], 1
        %v1066 = vld [vmem:[%s1065] ss:$2 sm:$0xff]
        %s1067 = scalar_lea.vmem [#allocation2], 49
        %v1068 = vld [vmem:[%s1067] ss:$2 sm:$0xff]
        %s1069 = scalar_lea.vmem [#allocation2], 97
        %v1070 = vld [vmem:[%s1069] ss:$2 sm:$0xff]
        %s1071 = scalar_lea.vmem [#allocation2], 145
        %v1072 = vld [vmem:[%s1071] ss:$2 sm:$0xff]
        %s1073 = scalar_lea.vmem [#allocation2], 193
        %v1074 = vld [vmem:[%s1073] ss:$2 sm:$0xff]
        %s1075 = scalar_lea.vmem [#allocation2], 241
        %v1076 = vld [vmem:[%s1075] ss:$2 sm:$0xff]
        %s1077 = scalar_lea.vmem [#allocation2], 289
        %v1078 = vld [vmem:[%s1077] ss:$2 sm:$0xff]
        %s1079 = scalar_lea.vmem [#allocation2], 337
        %v1080 = vld [vmem:[%s1079] ss:$2 sm:$0xff]
        %v1081 = vlaneseq
        %v1082 = vshrl.u32 %v1081, 7
        %v1083 = vsub.s32 1, %v1082
        %v1084 = vrot.slane %v1028, %v1083
        %v1085 = vmul.f32 %v1066, %v1084
        %v1086 = vmul.f32 %v1068, %v1084
        %v1087 = vmul.f32 %v1070, %v1084
        %v1088 = vmul.f32 %v1072, %v1084
        %v1089 = vmul.f32 %v1074, %v1084
        %v1090 = vmul.f32 %v1076, %v1084
        %v1091 = vmul.f32 %v1078, %v1084
        %v1092 = vmul.f32 %v1080, %v1084
        %v1093 = vadd.f32 %v1057, %v1085
        %v1094 = vadd.f32 %v1058, %v1086
        %v1095 = vadd.f32 %v1059, %v1087
        %v1096 = vadd.f32 %v1060, %v1088
        %v1097 = vadd.f32 %v1061, %v1089
        %v1098 = vadd.f32 %v1062, %v1090
        %v1099 = vadd.f32 %v1063, %v1091
        %v1100 = vadd.f32 %v1064, %v1092
        %s1101 = scalar_lea.vmem [#allocation2], 2
        %v1102 = vld [vmem:[%s1101] ss:$2 sm:$0xff]
        %s1103 = scalar_lea.vmem [#allocation2], 50
        %v1104 = vld [vmem:[%s1103] ss:$2 sm:$0xff]
        %s1105 = scalar_lea.vmem [#allocation2], 98
        %v1106 = vld [vmem:[%s1105] ss:$2 sm:$0xff]
        %s1107 = scalar_lea.vmem [#allocation2], 146
        %v1108 = vld [vmem:[%s1107] ss:$2 sm:$0xff]
        %s1109 = scalar_lea.vmem [#allocation2], 194
        %v1110 = vld [vmem:[%s1109] ss:$2 sm:$0xff]
        %s1111 = scalar_lea.vmem [#allocation2], 242
        %v1112 = vld [vmem:[%s1111] ss:$2 sm:$0xff]
        %s1113 = scalar_lea.vmem [#allocation2], 290
        %v1114 = vld [vmem:[%s1113] ss:$2 sm:$0xff]
        %s1115 = scalar_lea.vmem [#allocation2], 338
        %v1116 = vld [vmem:[%s1115] ss:$2 sm:$0xff]
        %v1117 = vlaneseq
        %v1118 = vshrl.u32 %v1117, 7
        %v1119 = vsub.s32 2, %v1118
        %v1120 = vrot.slane %v1028, %v1119
        %v1121 = vmul.f32 %v1102, %v1120
        %v1122 = vmul.f32 %v1104, %v1120
        %v1123 = vmul.f32 %v1106, %v1120
        %v1124 = vmul.f32 %v1108, %v1120
        %v1125 = vmul.f32 %v1110, %v1120
        %v1126 = vmul.f32 %v1112, %v1120
        %v1127 = vmul.f32 %v1114, %v1120
        %v1128 = vmul.f32 %v1116, %v1120
        %v1129 = vadd.f32 %v1093, %v1121
        %v1130 = vadd.f32 %v1094, %v1122
        %v1131 = vadd.f32 %v1095, %v1123
        %v1132 = vadd.f32 %v1096, %v1124
        %v1133 = vadd.f32 %v1097, %v1125
        %v1134 = vadd.f32 %v1098, %v1126
        %v1135 = vadd.f32 %v1099, %v1127
        %v1136 = vadd.f32 %v1100, %v1128
        %v1137 = vld [vmem:[%s995] ss:$2 sm:$0xff]
        %s1138 = scalar_lea.vmem %s995, 48 [#allocation2]
        %v1139 = vld [vmem:[%s1138] ss:$2 sm:$0xff]
        %s1140 = scalar_lea.vmem %s995, 96 [#allocation2]
        %v1141 = vld [vmem:[%s1140] ss:$2 sm:$0xff]
        %s1142 = scalar_lea.vmem %s995, 144 [#allocation2]
        %v1143 = vld [vmem:[%s1142] ss:$2 sm:$0xff]
        %s1144 = scalar_lea.vmem %s995, 192 [#allocation2]
        %v1145 = vld [vmem:[%s1144] ss:$2 sm:$0xff]
        %s1146 = scalar_lea.vmem %s995, 240 [#allocation2]
        %v1147 = vld [vmem:[%s1146] ss:$2 sm:$0xff]
        %s1148 = scalar_lea.vmem %s995, 288 [#allocation2]
        %v1149 = vld [vmem:[%s1148] ss:$2 sm:$0xff]
        %s1150 = scalar_lea.vmem %s995, 336 [#allocation2]
        %v1151 = vld [vmem:[%s1150] ss:$2 sm:$0xff]
        %v1152 = vlaneseq
        %v1153 = vshrl.u32 %v1152, 7
        %v1154 = vsub.s32 3, %v1153
        %v1155 = vrot.slane %v1028, %v1154
        %v1156 = vmul.f32 %v1137, %v1155
        %v1157 = vmul.f32 %v1139, %v1155
        %v1158 = vmul.f32 %v1141, %v1155
        %v1159 = vmul.f32 %v1143, %v1155
        %v1160 = vmul.f32 %v1145, %v1155
        %v1161 = vmul.f32 %v1147, %v1155
        %v1162 = vmul.f32 %v1149, %v1155
        %v1163 = vmul.f32 %v1151, %v1155
        %v1164 = vadd.f32 %v1129, %v1156
        %v1165 = vadd.f32 %v1130, %v1157
        %v1166 = vadd.f32 %v1131, %v1158
        %v1167 = vadd.f32 %v1132, %v1159
        %v1168 = vadd.f32 %v1133, %v1160
        %v1169 = vadd.f32 %v1134, %v1161
        %v1170 = vadd.f32 %v1135, %v1162
        %v1171 = vadd.f32 %v1136, %v1163
        %s1172 = scalar_lea.vmem %s995, 1 [#allocation2]
        %v1173 = vld [vmem:[%s1172] ss:$2 sm:$0xff]
        %s1174 = scalar_lea.vmem %s995, 49 [#allocation2]
        %v1175 = vld [vmem:[%s1174] ss:$2 sm:$0xff]
        %s1176 = scalar_lea.vmem %s995, 97 [#allocation2]
        %v1177 = vld [vmem:[%s1176] ss:$2 sm:$0xff]
        %s1178 = scalar_lea.vmem %s995, 145 [#allocation2]
        %v1179 = vld [vmem:[%s1178] ss:$2 sm:$0xff]
        %s1180 = scalar_lea.vmem %s995, 193 [#allocation2]
        %v1181 = vld [vmem:[%s1180] ss:$2 sm:$0xff]
        %s1182 = scalar_lea.vmem %s995, 241 [#allocation2]
        %v1183 = vld [vmem:[%s1182] ss:$2 sm:$0xff]
        %s1184 = scalar_lea.vmem %s995, 289 [#allocation2]
        %v1185 = vld [vmem:[%s1184] ss:$2 sm:$0xff]
        %s1186 = scalar_lea.vmem %s995, 337 [#allocation2]
        %v1187 = vld [vmem:[%s1186] ss:$2 sm:$0xff]
        %v1188 = vlaneseq
        %v1189 = vshrl.u32 %v1188, 7
        %v1190 = vsub.s32 4, %v1189
        %v1191 = vrot.slane %v1028, %v1190
        %v1192 = vmul.f32 %v1173, %v1191
        %v1193 = vmul.f32 %v1175, %v1191
        %v1194 = vmul.f32 %v1177, %v1191
        %v1195 = vmul.f32 %v1179, %v1191
        %v1196 = vmul.f32 %v1181, %v1191
        %v1197 = vmul.f32 %v1183, %v1191
        %v1198 = vmul.f32 %v1185, %v1191
        %v1199 = vmul.f32 %v1187, %v1191
        %v1200 = vadd.f32 %v1164, %v1192
        %v1201 = vadd.f32 %v1165, %v1193
        %v1202 = vadd.f32 %v1166, %v1194
        %v1203 = vadd.f32 %v1167, %v1195
        %v1204 = vadd.f32 %v1168, %v1196
        %v1205 = vadd.f32 %v1169, %v1197
        %v1206 = vadd.f32 %v1170, %v1198
        %v1207 = vadd.f32 %v1171, %v1199
        %s1208 = scalar_lea.vmem %s995, 2 [#allocation2]
        %v1209 = vld [vmem:[%s1208] ss:$2 sm:$0xff]
        %s1210 = scalar_lea.vmem %s995, 50 [#allocation2]
        %v1211 = vld [vmem:[%s1210] ss:$2 sm:$0xff]
        %s1212 = scalar_lea.vmem %s995, 98 [#allocation2]
        %v1213 = vld [vmem:[%s1212] ss:$2 sm:$0xff]
        %s1214 = scalar_lea.vmem %s995, 146 [#allocation2]
        %v1215 = vld [vmem:[%s1214] ss:$2 sm:$0xff]
        %s1216 = scalar_lea.vmem %s995, 194 [#allocation2]
        %v1217 = vld [vmem:[%s1216] ss:$2 sm:$0xff]
        %s1218 = scalar_lea.vmem %s995, 242 [#allocation2]
        %v1219 = vld [vmem:[%s1218] ss:$2 sm:$0xff]
        %s1220 = scalar_lea.vmem %s995, 290 [#allocation2]
        %v1221 = vld [vmem:[%s1220] ss:$2 sm:$0xff]
        %s1222 = scalar_lea.vmem %s995, 338 [#allocation2]
        %v1223 = vld [vmem:[%s1222] ss:$2 sm:$0xff]
        %v1224 = vlaneseq
        %v1225 = vshrl.u32 %v1224, 7
        %v1226 = vsub.s32 5, %v1225
        %v1227 = vrot.slane %v1028, %v1226
        %v1228 = vmul.f32 %v1209, %v1227
        %v1229 = vmul.f32 %v1211, %v1227
        %v1230 = vmul.f32 %v1213, %v1227
        %v1231 = vmul.f32 %v1215, %v1227
        %v1232 = vmul.f32 %v1217, %v1227
        %v1233 = vmul.f32 %v1219, %v1227
        %v1234 = vmul.f32 %v1221, %v1227
        %v1235 = vmul.f32 %v1223, %v1227
        %v1236 = vadd.f32 %v1200, %v1228
        %v1237 = vadd.f32 %v1201, %v1229
        %v1238 = vadd.f32 %v1202, %v1230
        %v1239 = vadd.f32 %v1203, %v1231
        %v1240 = vadd.f32 %v1204, %v1232
        %v1241 = vadd.f32 %v1205, %v1233
        %v1242 = vadd.f32 %v1206, %v1234
        %v1243 = vadd.f32 %v1207, %v1235
        %s1244 = scalar_lea.vmem [#allocation2], 48
        %v1245 = vld [vmem:[%s1244] ss:$2 sm:$0xff]
        %s1246 = scalar_lea.vmem %s1244, 48 [#allocation2]
        %v1247 = vld [vmem:[%s1246] ss:$2 sm:$0xff]
        %s1248 = scalar_lea.vmem %s1244, 96 [#allocation2]
        %v1249 = vld [vmem:[%s1248] ss:$2 sm:$0xff]
        %s1250 = scalar_lea.vmem %s1244, 144 [#allocation2]
        %v1251 = vld [vmem:[%s1250] ss:$2 sm:$0xff]
        %s1252 = scalar_lea.vmem %s1244, 192 [#allocation2]
        %v1253 = vld [vmem:[%s1252] ss:$2 sm:$0xff]
        %s1254 = scalar_lea.vmem %s1244, 240 [#allocation2]
        %v1255 = vld [vmem:[%s1254] ss:$2 sm:$0xff]
        %s1256 = scalar_lea.vmem %s1244, 288 [#allocation2]
        %v1257 = vld [vmem:[%s1256] ss:$2 sm:$0xff]
        %s1258 = scalar_lea.vmem %s1244, 336 [#allocation2]
        %v1259 = vld [vmem:[%s1258] ss:$2 sm:$0xff]
        %v1260 = vlaneseq
        %v1261 = vshrl.u32 %v1260, 7
        %v1262 = vsub.s32 6, %v1261
        %v1263 = vrot.slane %v1028, %v1262
        %v1264 = vmul.f32 %v1245, %v1263
        %v1265 = vmul.f32 %v1247, %v1263
        %v1266 = vmul.f32 %v1249, %v1263
        %v1267 = vmul.f32 %v1251, %v1263
        %v1268 = vmul.f32 %v1253, %v1263
        %v1269 = vmul.f32 %v1255, %v1263
        %v1270 = vmul.f32 %v1257, %v1263
        %v1271 = vmul.f32 %v1259, %v1263
        %v1272 = vadd.f32 %v1236, %v1264
        %v1273 = vadd.f32 %v1237, %v1265
        %v1274 = vadd.f32 %v1238, %v1266
        %v1275 = vadd.f32 %v1239, %v1267
        %v1276 = vadd.f32 %v1240, %v1268
        %v1277 = vadd.f32 %v1241, %v1269
        %v1278 = vadd.f32 %v1242, %v1270
        %v1279 = vadd.f32 %v1243, %v1271
        %s1280 = scalar_lea.vmem %s1244, 1 [#allocation2]
        %v1281 = vld [vmem:[%s1280] ss:$2 sm:$0xff]
        %s1282 = scalar_lea.vmem %s1244, 49 [#allocation2]
        %v1283 = vld [vmem:[%s1282] ss:$2 sm:$0xff]
        %s1284 = scalar_lea.vmem %s1244, 97 [#allocation2]
        %v1285 = vld [vmem:[%s1284] ss:$2 sm:$0xff]
        %s1286 = scalar_lea.vmem %s1244, 145 [#allocation2]
        %v1287 = vld [vmem:[%s1286] ss:$2 sm:$0xff]
        %s1288 = scalar_lea.vmem %s1244, 193 [#allocation2]
        %v1289 = vld [vmem:[%s1288] ss:$2 sm:$0xff]
        %s1290 = scalar_lea.vmem %s1244, 241 [#allocation2]
        %v1291 = vld [vmem:[%s1290] ss:$2 sm:$0xff]
        %s1292 = scalar_lea.vmem %s1244, 289 [#allocation2]
        %v1293 = vld [vmem:[%s1292] ss:$2 sm:$0xff]
        %s1294 = scalar_lea.vmem %s1244, 337 [#allocation2]
        %v1295 = vld [vmem:[%s1294] ss:$2 sm:$0xff]
        %v1296 = vlaneseq
        %v1297 = vshrl.u32 %v1296, 7
        %v1298 = vsub.s32 7, %v1297
        %v1299 = vrot.slane %v1028, %v1298
        %v1300 = vmul.f32 %v1281, %v1299
        %v1301 = vmul.f32 %v1283, %v1299
        %v1302 = vmul.f32 %v1285, %v1299
        %v1303 = vmul.f32 %v1287, %v1299
        %v1304 = vmul.f32 %v1289, %v1299
        %v1305 = vmul.f32 %v1291, %v1299
        %v1306 = vmul.f32 %v1293, %v1299
        %v1307 = vmul.f32 %v1295, %v1299
        %v1308 = vadd.f32 %v1272, %v1300
        %v1309 = vadd.f32 %v1273, %v1301
        %v1310 = vadd.f32 %v1274, %v1302
        %v1311 = vadd.f32 %v1275, %v1303
        %v1312 = vadd.f32 %v1276, %v1304
        %v1313 = vadd.f32 %v1277, %v1305
        %v1314 = vadd.f32 %v1278, %v1306
        %v1315 = vadd.f32 %v1279, %v1307
        %s1316 = scalar_lea.vmem %s1244, 2 [#allocation2]
        %v1317 = vld [vmem:[%s1316] ss:$2 sm:$0xff]
        %s1318 = scalar_lea.vmem %s1244, 50 [#allocation2]
        %v1319 = vld [vmem:[%s1318] ss:$2 sm:$0xff]
        %s1320 = scalar_lea.vmem %s1244, 98 [#allocation2]
        %v1321 = vld [vmem:[%s1320] ss:$2 sm:$0xff]
        %s1322 = scalar_lea.vmem %s1244, 146 [#allocation2]
        %v1323 = vld [vmem:[%s1322] ss:$2 sm:$0xff]
        %s1324 = scalar_lea.vmem %s1244, 194 [#allocation2]
        %v1325 = vld [vmem:[%s1324] ss:$2 sm:$0xff]
        %s1326 = scalar_lea.vmem %s1244, 242 [#allocation2]
        %v1327 = vld [vmem:[%s1326] ss:$2 sm:$0xff]
        %s1328 = scalar_lea.vmem %s1244, 290 [#allocation2]
        %v1329 = vld [vmem:[%s1328] ss:$2 sm:$0xff]
        %s1330 = scalar_lea.vmem %s1244, 338 [#allocation2]
        %v1331 = vld [vmem:[%s1330] ss:$2 sm:$0xff]
        %v1332 = vlaneseq
        %v1333 = vshrl.u32 %v1332, 7
        %v1334 = vsub.s32 0, %v1333
        %v1335 = vrot.slane %v1029, %v1334
        %v1336 = vmul.f32 %v1317, %v1335
        %v1337 = vmul.f32 %v1319, %v1335
        %v1338 = vmul.f32 %v1321, %v1335
        %v1339 = vmul.f32 %v1323, %v1335
        %v1340 = vmul.f32 %v1325, %v1335
        %v1341 = vmul.f32 %v1327, %v1335
        %v1342 = vmul.f32 %v1329, %v1335
        %v1343 = vmul.f32 %v1331, %v1335
        %v1344 = vadd.f32 %v1308, %v1336
        %v1345 = vadd.f32 %v1309, %v1337
        %v1346 = vadd.f32 %v1310, %v1338
        %v1347 = vadd.f32 %v1311, %v1339
        %v1348 = vadd.f32 %v1312, %v1340
        %v1349 = vadd.f32 %v1313, %v1341
        %v1350 = vadd.f32 %v1314, %v1342
        %v1351 = vadd.f32 %v1315, %v1343
        %v1352 = vld [vmem:[%s5] sm:$0x1]
        %v1354 = vlaneseq
        %v1355 = vshrl.u32 %v1354, 7
        %v1356 = vsub.s32 0, %v1355
        %v1357 = vrot.slane %v1352, %v1356
        %v1359 = vmul.f32 %v1344, %v1357
        %v1360 = vmul.f32 %v1345, %v1357
        %v1361 = vmul.f32 %v1346, %v1357
        %v1362 = vmul.f32 %v1347, %v1357
        %v1363 = vmul.f32 %v1348, %v1357
        %v1364 = vmul.f32 %v1349, %v1357
        %v1365 = vmul.f32 %v1350, %v1357
        %v1366 = vmul.f32 %v1351, %v1357
        %v1367 = vld [vmem:[%s6] sm:$0x1]
        %v1369 = vlaneseq
        %v1370 = vshrl.u32 %v1369, 7
        %v1371 = vsub.s32 0, %v1370
        %v1372 = vrot.slane %v1367, %v1371
        %v1374 = vadd.f32 %v1359, %v1372
        %v1375 = vadd.f32 %v1360, %v1372
        %v1376 = vadd.f32 %v1361, %v1372
        %v1377 = vadd.f32 %v1362, %v1372
        %v1378 = vadd.f32 %v1363, %v1372
        %v1379 = vadd.f32 %v1364, %v1372
        %v1380 = vadd.f32 %v1365, %v1372
        %v1381 = vadd.f32 %v1366, %v1372
        %vm1382 = vcmp.ge.f32.partialorder %v1374, 0.0
        %vm1383 = vcmp.ge.f32.partialorder %v1375, 0.0
        %vm1384 = vcmp.ge.f32.partialorder %v1376, 0.0
        %vm1385 = vcmp.ge.f32.partialorder %v1377, 0.0
        %vm1386 = vcmp.ge.f32.partialorder %v1378, 0.0
        %vm1387 = vcmp.ge.f32.partialorder %v1379, 0.0
        %vm1388 = vcmp.ge.f32.partialorder %v1380, 0.0
        %vm1389 = vcmp.ge.f32.partialorder %v1381, 0.0
        %v1390 = vmul.f32 %v1374, 0.01
        %v1391 = vmul.f32 %v1375, 0.01
        %v1392 = vmul.f32 %v1376, 0.01
        %v1393 = vmul.f32 %v1377, 0.01
        %v1394 = vmul.f32 %v1378, 0.01
        %v1395 = vmul.f32 %v1379, 0.01
        %v1396 = vmul.f32 %v1380, 0.01
        %v1397 = vmul.f32 %v1381, 0.01
        %v1398 = vsel %vm1382, %v1374, %v1390
        %v1399 = vsel %vm1383, %v1375, %v1391
        %v1400 = vsel %vm1384, %v1376, %v1392
        %v1401 = vsel %vm1385, %v1377, %v1393
        %v1402 = vsel %vm1386, %v1378, %v1394
        %v1403 = vsel %vm1387, %v1379, %v1395
        %v1404 = vsel %vm1388, %v1380, %v1396
        %v1405 = vsel %vm1389, %v1381, %v1397
        %v1406 = vld [vmem:[%s7] sm:$0xf]
        %v1408 = vsel %vm939, %v1398, 0
        %v1411 = vsel %vm939, %v1399, 0
        %v1414 = vsel %vm939, %v1400, 0
        %v1417 = vsel %vm939, %v1401, 0
        %v1420 = vsel %vm939, %v1402, 0
        %v1423 = vsel %vm939, %v1403, 0
        %v1426 = vsel %vm939, %v1404, 0
        %v1429 = vsel %vm939, %v1405, 0
        %vm1431 = vcmask 1043456
        %v1433 = vsel %vm1431, %v1406, 0
        %1435 = vmatprep.subr.mxu0 0.0
        %1436 = vmatpush1.msra.mxu0 %v1433
        %1437 = vmatprep.subr.mxu0 0.0
        %1438 = vmatpush1.msra.mxu0 0.0
        %1439 = vmatprep.subr.mxu0 0.0
        %1440 = vmatpush1.msra.mxu0 0.0
        %1441 = vmatprep.subr.mxu0 0.0
        %1442 = vmatpush1.msra.mxu0 0.0
        %1443 = vmatprep.subr.mxu0 0.0
        %1444 = vmatpush1.msra.mxu0 0.0
        %1445 = vmatprep.subr.mxu0 0.0
        %1446 = vmatpush1.msra.mxu0 0.0
        %1447 = vmatprep.subr.mxu0 0.0
        %1448 = vmatpush1.msra.mxu0 0.0
        %1449 = vmatprep.subr.mxu0 0.0
        %1450 = vmatpush1.msra.mxu0 0.0
        %1451 = vmatprep.subr.mxu0 0.0
        %1452 = vmatpush1.msra.mxu0 0.0
        %1453 = vmatprep.subr.mxu0 0.0
        %1454 = vmatpush1.msra.mxu0 0.0
        %1455 = vmatprep.subr.mxu0 0.0
        %1456 = vmatpush1.msra.mxu0 0.0
        %1457 = vmatprep.subr.mxu0 0.0
        %1458 = vmatpush1.msra.mxu0 0.0
        %1459 = vmatprep.subr.mxu0 0.0
        %1460 = vmatpush1.msra.mxu0 0.0
        %1461 = vmatprep.subr.mxu0 0.0
        %1462 = vmatpush1.msra.mxu0 0.0
        %1463 = vmatprep.subr.mxu0 0.0
        %1464 = vmatpush1.msra.mxu0 0.0
        %1465 = vmatprep.subr.mxu0 0.0
        %1466 = vmatpush1.msra.mxu0 0.0
        %1467 = vmatprep.subr.mxu0 0.0
        %1468 = vmatpush1.msra.mxu0 0.0
        %1469 = vmatprep.subr.mxu0 0.0
        %1470 = vmatpush1.msra.mxu0 0.0
        %1471 = vmatprep.subr.mxu0 0.0
        %1472 = vmatpush1.msra.mxu0 0.0
        %1473 = vmatprep.subr.mxu0 0.0
        %1474 = vmatpush1.msra.mxu0 0.0
        %1475 = vmatprep.subr.mxu0 0.0
        %1476 = vmatpush1.msra.mxu0 0.0
        %1477 = vmatprep.subr.mxu0 0.0
        %1478 = vmatpush1.msra.mxu0 0.0
        %1479 = vmatprep.subr.mxu0 0.0
        %1480 = vmatpush1.msra.mxu0 0.0
        %1481 = vmatprep.subr.mxu0 0.0
        %1482 = vmatpush1.msra.mxu0 0.0
        %1483 = vmatprep.subr.mxu0 0.0
        %1484 = vmatpush1.msra.mxu0 0.0
        %1485 = vmatprep.subr.mxu0 0.0
        %1486 = vmatpush1.msra.mxu0 0.0
        %1487 = vmatprep.subr.mxu0 0.0
        %1488 = vmatpush1.msra.mxu0 0.0
        %1489 = vmatprep.subr.mxu0 0.0
        %1490 = vmatpush1.msra.mxu0 0.0
        %1491 = vmatprep.subr.mxu0 0.0
        %1492 = vmatpush1.msra.mxu0 0.0
        %1493 = vmatprep.subr.mxu0 0.0
        %1494 = vmatpush1.msra.mxu0 0.0
        %1495 = vmatprep.subr.mxu0 0.0
        %1496 = vmatpush1.msra.mxu0 0.0
        %1497 = vmatprep.subr.mxu0 0.0
        %1498 = vmatpush1.msra.mxu0 0.0
        %1499 = vmatprep.mubr.f32.mxu0 0.0
        %1500 = vmatmul.mubr.f32.gmra.mrb[0].mxu0 %v1408
        %v1501 = vpop.f32.mrb[0].mxu0
        %v1502 = vadd.f32 0.0, %v1501
        %v1503 = vpop.f32.mrb[0].mxu0
        %1504 = vmatprep.mubr.f32.mxu0 0.0
        %1505 = vmatmul.mubr.f32.gmra.mrb[0].mxu0 %v1411
        %v1506 = vpop.f32.mrb[0].mxu0
        %v1507 = vadd.f32 0.0, %v1506
        %v1508 = vpop.f32.mrb[0].mxu0
        %1509 = vmatprep.mubr.f32.mxu0 0.0
        %1510 = vmatmul.mubr.f32.gmra.mrb[0].mxu0 %v1414
        %v1511 = vpop.f32.mrb[0].mxu0
        %v1512 = vadd.f32 0.0, %v1511
        %v1513 = vpop.f32.mrb[0].mxu0
        %1514 = vmatprep.mubr.f32.mxu0 0.0
        %1515 = vmatmul.mubr.f32.gmra.mrb[0].mxu0 %v1417
        %v1516 = vpop.f32.mrb[0].mxu0
        %v1517 = vadd.f32 0.0, %v1516
        %v1518 = vpop.f32.mrb[0].mxu0
        %1519 = vmatprep.mubr.f32.mxu0 0.0
        %1520 = vmatmul.mubr.f32.gmra.mrb[0].mxu0 %v1420
        %v1521 = vpop.f32.mrb[0].mxu0
        %v1522 = vadd.f32 0.0, %v1521
        %v1523 = vpop.f32.mrb[0].mxu0
        %1524 = vmatprep.mubr.f32.mxu0 0.0
        %1525 = vmatmul.mubr.f32.gmra.mrb[0].mxu0 %v1423
        %v1526 = vpop.f32.mrb[0].mxu0
        %v1527 = vadd.f32 0.0, %v1526
        %v1528 = vpop.f32.mrb[0].mxu0
        %1529 = vmatprep.mubr.f32.mxu0 0.0
        %1530 = vmatmul.mubr.f32.gmra.mrb[0].mxu0 %v1426
        %v1531 = vpop.f32.mrb[0].mxu0
        %v1532 = vadd.f32 0.0, %v1531
        %v1533 = vpop.f32.mrb[0].mxu0
        %1534 = vmatprep.mubr.f32.mxu0 0.0
        %1535 = vmatmul.mubr.f32.gmra.mrb[0].mxu0 %v1429
        %v1536 = vpop.f32.mrb[0].mxu0
        %v1537 = vadd.f32 0.0, %v1536
        %v1538 = vpop.f32.mrb[0].mxu0
        %1539 = vdwg.mxu0
        %v1540 = vld [vmem:[%s8] sm:$0x1]
        %v1542 = vlaneseq
        %v1543 = vshrl.u32 %v1542, 7
        %v1544 = vsub.s32 0, %v1543
        %v1545 = vrot.slane %v1540, %v1544
        %v1547 = vmul.f32 %v1502, %v1545
        %v1548 = vmul.f32 %v1507, %v1545
        %v1549 = vmul.f32 %v1512, %v1545
        %v1550 = vmul.f32 %v1517, %v1545
        %v1551 = vmul.f32 %v1522, %v1545
        %v1552 = vmul.f32 %v1527, %v1545
        %v1553 = vmul.f32 %v1532, %v1545
        %v1554 = vmul.f32 %v1537, %v1545
        %v1555 = vld [vmem:[%s9] sm:$0x1]
        %v1557 = vlaneseq
        %v1558 = vshrl.u32 %v1557, 7
        %v1559 = vsub.s32 0, %v1558
        %v1560 = vrot.slane %v1555, %v1559
        %v1562 = vadd.f32 %v1547, %v1560
        %v1563 = vadd.f32 %v1548, %v1560
        %v1564 = vadd.f32 %v1549, %v1560
        %v1565 = vadd.f32 %v1550, %v1560
        %v1566 = vadd.f32 %v1551, %v1560
        %v1567 = vadd.f32 %v1552, %v1560
        %v1568 = vadd.f32 %v1553, %v1560
        %v1569 = vadd.f32 %v1554, %v1560
        %1570 = vxpose.xlu0.b32.start [1/16] %v1562, 128
        %1571 = vxpose.xlu0.b32.cont [2/16] %v1563, 128
        %1572 = vxpose.xlu0.b32.cont [3/16] %v1564, 128
        %1573 = vxpose.xlu0.b32.cont [4/16] %v1565, 128
        %1574 = vxpose.xlu0.b32.cont [5/16] %v1566, 128
        %1575 = vxpose.xlu0.b32.cont [6/16] %v1567, 128
        %1576 = vxpose.xlu0.b32.cont [7/16] %v1568, 128
        %1577 = vxpose.xlu0.b32.cont [8/16] %v1569, 128
        %1578 = vxpose.xlu0.b32.cont [9/16] 0.0, 128
        %1579 = vxpose.xlu0.b32.cont [10/16] 0.0, 128
        %1580 = vxpose.xlu0.b32.cont [11/16] 0.0, 128
        %1581 = vxpose.xlu0.b32.cont [12/16] 0.0, 128
        %1582 = vxpose.xlu0.b32.cont [13/16] 0.0, 128
        %1583 = vxpose.xlu0.b32.cont [14/16] 0.0, 128
        %1584 = vxpose.xlu0.b32.cont [15/16] 0.0, 128
        %1585 = vxpose.xlu0.b32.end [16/16] 0.0, 128
        %v1586 = vpop.trf.xlu0
        %v1587 = vpop.trf.xlu0
        %v1588 = vpop.trf.xlu0
        %v1589 = vpop.trf.xlu0
        %v1590 = vpop.trf.xlu0
        %v1591 = vpop.trf.xlu0
        %v1592 = vpop.trf.xlu0
        %v1593 = vpop.trf.xlu0
        %v1594 = vpop.trf.xlu0
        %v1595 = vpop.trf.xlu0
        %v1596 = vpop.trf.xlu0
        %v1597 = vpop.trf.xlu0
        %v1598 = vpop.trf.xlu0
        %v1599 = vpop.trf.xlu0
        %v1600 = vpop.trf.xlu0
        %v1601 = vpop.trf.xlu0
        %vm1602 = vcmask 523264
        %1603 = vst.msk [vmem:[%s375] sm:$0xff] %vm1602, %v1586
        %1604 = vst.msk [vmem:[%s375 + $0x8] sm:$0xff] %vm1602, %v1587
        %s1605 = sand.u32 %s250, 1
        %s1606 = scalar_lea.sflag [#allocation5], %s1605
        %s1607 = sand.u32 %s250, 1
        %s1608 = smul.addr %s1607, 16
        %s1609 = scalar_lea.vmem [#allocation6], %s1608
        // Predicated region
        $region65: #{tpu_custom_call.1} parent=59 // pred_check
          %p1610 = pneg %p260
        $region66: #{tpu_custom_call.1} parent=59 // pred_check_branch
          %1612 = sbr.rel (%p1610) target = $region68
        $region67: #{tpu_custom_call.1} parent=59 // pred_region
          %s1614 = ssub.s32 256, 256
          %1615 = vsyncadd %s1606, %s1614
          %s1616 = smul.addr %s27, 2
          %s1617 = smul.addr %s1616, 128
          %s1618 = scalar_lea.hbm %s10, %s1617
          %s1619 = sshll.u32 %s1609, 4
          %s1620 = int_to_ptr.vmem [resolvable:$true] %s1619
          %1625 = dma.vmem_to_hbm [thread:$0]  %s1620, 256, %s1618, %s1606, 128, 128, 8
        $region68: #{tpu_custom_call.1} parent=59 // pred_fallthru
          _
      $region60: #{tpu_custom_call.1} parent=5 // pred_fallthru
        _
      %p1626 = scmp.le.s32.totalorder 2, %s22
      // Predicated region
      $region69: #{tpu_custom_call.1} parent=5 // pred_check
        %p1627 = pneg %p1626
      $region70: #{tpu_custom_call.1} parent=5 // pred_check_branch
        %1629 = sbr.rel (%p1627) target = $region72
      $region71: #{tpu_custom_call.1} parent=5 // pred_region
        %s1630 = ssub.s32 %s22, 2
        // Predicated region
        $region73: #{tpu_custom_call.1} parent=71 // pred_check
          %p1631 = pneg %p266
        $region74: #{tpu_custom_call.1} parent=71 // pred_check_branch
          %1633 = sbr.rel (%p1631) target = $region76
        $region75: #{tpu_custom_call.1} parent=71 // pred_region
          %s1634 = sand.u32 %s251, 1
          %s1635 = scalar_lea.sflag [#allocation5], %s1634
          %s1636 = sand.u32 %s251, 1
          %s1637 = smul.addr %s1636, 16
          %s1638 = scalar_lea.vmem [#allocation6], %s1637
          %1639 = dma.done %s1635, 256
        $region76: #{tpu_custom_call.1} parent=71 // pred_fallthru
          _
      $region72: #{tpu_custom_call.1} parent=5 // pred_fallthru
        _
    $region6: #{tpu_custom_call.1} parent=1 // loop_footer
      %s26 = sadd.s32 1, %s22
    $region7: #{tpu_custom_call.1} parent=1 // loop_footer_branch
      %21 = sbr.rel target = $region3
    $region8: #{tpu_custom_call.1} parent=1 // loop_exit
      _
    %1640 = vsyncpa [#allocation4], 1
    %s1641 = scalar_lea.sflag [#allocation4], 1
    %1642 = vsyncpa %s1641, 1
    %1643 = vsyncpa [#allocation5], 1
    %s1644 = scalar_lea.sflag [#allocation5], 1
    %1645 = vsyncpa %s1644, 1

</llo_original>
